<compile_context>
chip_gen: v6e
topology: v6e:2x2x1
jax: 0.10.0
libtpu: 0.0.40
codegen_flags: <defaults>
</compile_context>

<pallas_src>
import jax
import jax.numpy as jnp
from jax.experimental import pallas as pl
from jax.experimental.pallas import tpu as pltpu

IM_DIM = 784
HIDDEN = 128
DIMS = [IM_DIM, HIDDEN * 4, HIDDEN * 2, HIDDEN, 1]  # 784, 512, 256, 128, 1
OUT_PAD = 128          # lane-dense output slab width (column 0 holds the logit)
DEFAULT_TB = 256       # batch tile; matches the 256-wide MXU on v6e/v7x


def _leaky_relu(x, slope=0.2):
    return jnp.where(x > 0, x, slope * x)


def disc_kernel(x_ref,
                w1_ref, b1_ref,
                w2_ref, b2_ref,
                w3_ref, b3_ref,
                w4_ref, b4_ref,
                o_ref):
    # Layers 1-3: bf16 MXU matmuls with f32 accumulation + VPU LeakyReLU.
    h = x_ref[...]                                                    # (tb, 784) f32
    h = jnp.dot(h.astype(jnp.bfloat16), w1_ref[...],
                preferred_element_type=jnp.float32) + b1_ref[...]
    h = _leaky_relu(h)
    h = jnp.dot(h.astype(jnp.bfloat16), w2_ref[...],
                preferred_element_type=jnp.float32) + b2_ref[...]
    h = _leaky_relu(h)
    h = jnp.dot(h.astype(jnp.bfloat16), w3_ref[...],
                preferred_element_type=jnp.float32) + b3_ref[...]
    h = _leaky_relu(h)                                                # (tb, 128) f32

    # Layer 4 (128 -> 1): N=1 MXU matmul wastes nearly all MXU columns, so do
    # it on the VPU (elementwise mul) + XLU (lane reduce).
    w4 = w4_ref[...].astype(jnp.float32)                              # (1, 128)
    logit = jnp.sum(h * w4, axis=-1, keepdims=True) + b4_ref[...]     # (tb, 1)

    # Lane-dense store into the padded 128-wide output slab (col 0 meaningful).
    o_ref[...] = jnp.broadcast_to(logit, o_ref.shape).astype(o_ref.dtype)


def _round_up(x, m):
    return (x + m - 1) // m * m


def discriminator_forward(img, params, *, tb=DEFAULT_TB):
    """img: (B, 784) float32.
    params: list of (W, b) per layer; W is (in, out) bfloat16, b is (1, out) float32."""
    batch = img.shape[0]
    tb = min(tb, _round_up(batch, 8))
    batch_p = _round_up(batch, tb)
    if batch_p != batch:
        img = jnp.pad(img, ((0, batch_p - batch), (0, 0)))

    (w1, b1), (w2, b2), (w3, b3), (w4, b4) = params
    w4_row = w4.reshape(1, HIDDEN)  # (128, 1) -> (1, 128) for the VPU final layer

    grid = (batch_p // tb,)

    def resident(shape):
        # Weight/bias blocks: same block every grid step -> stay resident in VMEM.
        return pl.BlockSpec(shape, lambda i: (0, 0))

    flops = 2 * batch_p * sum(DIMS[i] * DIMS[i + 1] for i in range(len(DIMS) - 1))
    weight_bytes = sum(int(a.size) * a.dtype.itemsize
                       for a in (w1, b1, w2, b2, w3, b3, w4_row, b4))
    bytes_accessed = int(img.size) * 4 + batch_p * OUT_PAD * 4 + weight_bytes

    out = pl.pallas_call(
        disc_kernel,
        out_shape=jax.ShapeDtypeStruct((batch_p, OUT_PAD), jnp.float32),
        grid=grid,
        in_specs=[
            pl.BlockSpec((tb, IM_DIM), lambda i: (i, 0)),   # x: batch-tiled
            resident(w1.shape), resident(b1.shape),
            resident(w2.shape), resident(b2.shape),
            resident(w3.shape), resident(b3.shape),
            resident(w4_row.shape), resident(b4.shape),
        ],
        out_specs=pl.BlockSpec((tb, OUT_PAD), lambda i: (i, 0)),
        compiler_params=pltpu.CompilerParams(
            dimension_semantics=("parallel",),
        ),
        cost_estimate=pl.CostEstimate(
            flops=flops, transcendentals=0, bytes_accessed=bytes_accessed),
    )(img, w1, b1, w2, b2, w3, b3, w4_row, b4)

    return out[:batch, :1]


def init_params(key):
    """Deterministic synthetic init (PyTorch-Linear-like uniform scaling).
    Weights stored in bf16 (MXU native), biases in f32."""
    params = []
    for i in range(len(DIMS) - 1):
        d_in, d_out = DIMS[i], DIMS[i + 1]
        key, kw, kb = jax.random.split(key, 3)
        bound = 1.0 / jnp.sqrt(d_in)
        w = jax.random.uniform(kw, (d_in, d_out), jnp.float32, -bound, bound)
        b = jax.random.uniform(kb, (1, d_out), jnp.float32, -bound, bound)
        params.append((w.astype(jnp.bfloat16), b))
    return params


def reference_forward(img, params):
    """Pure-JAX reference with the same bf16-weight / f32-accumulate numerics."""
    h = img
    for w, b in params[:3]:
        h = jnp.dot(h.astype(jnp.bfloat16), w,
                    preferred_element_type=jnp.float32) + b
        h = jnp.where(h > 0, h, 0.2 * h)
    w4, b4 = params[3]
    w4_row = w4.reshape(1, -1).astype(jnp.float32)
    return jnp.sum(h * w4_row, axis=-1, keepdims=True) + b4


if __name__ == "__main__":
    key = jax.random.PRNGKey(0)
    key, k_img = jax.random.split(key)

    batch = 8
    img = jax.random.normal(k_img, (batch, IM_DIM), jnp.float32)  # flattened MNIST-like input
    params = init_params(key)

    out = discriminator_forward(img, params)
    out = jax.block_until_ready(out)

    ref = reference_forward(img, params)
    assert out.shape == (batch, 1), out.shape
    assert jnp.allclose(out, ref, atol=2e-3, rtol=2e-3), "mismatch vs JAX reference"

    print("KERNEL_OK")
</pallas_src>

<mosaic_0001>
module attributes {stable_mosaic.version = 11 : i64} {
  func.func @disc_kernel(%arg0: i32, %arg1: memref<8x784xf32, #tpu.memory_space<vmem>>, %arg2: memref<784x512xbf16, #tpu.memory_space<vmem>>, %arg3: memref<1x512xf32, #tpu.memory_space<vmem>>, %arg4: memref<512x256xbf16, #tpu.memory_space<vmem>>, %arg5: memref<1x256xf32, #tpu.memory_space<vmem>>, %arg6: memref<256x128xbf16, #tpu.memory_space<vmem>>, %arg7: memref<1x128xf32, #tpu.memory_space<vmem>>, %arg8: memref<1x128xbf16, #tpu.memory_space<vmem>>, %arg9: memref<1x1xf32, #tpu.memory_space<vmem>>, %arg10: memref<8x128xf32, #tpu.memory_space<vmem>>) attributes {dimension_semantics = [#tpu.dimension_semantics<parallel>], iteration_bounds = array<i64: 1>, scalar_prefetch = 0 : i64, scratch_operands = 0 : i64, tpu.core_type = #tpu.core_type<tc>, window_params = [{transform_indices = @transform_0, window_bounds = array<i64: 8, 784>}, {pipeline_mode = #tpu.pipeline_mode<synchronous>, transform_indices = @transform_1, window_bounds = array<i64: 784, 512>}, {pipeline_mode = #tpu.pipeline_mode<synchronous>, transform_indices = @transform_2, window_bounds = array<i64: 1, 512>}, {pipeline_mode = #tpu.pipeline_mode<synchronous>, transform_indices = @transform_3, window_bounds = array<i64: 512, 256>}, {pipeline_mode = #tpu.pipeline_mode<synchronous>, transform_indices = @transform_4, window_bounds = array<i64: 1, 256>}, {pipeline_mode = #tpu.pipeline_mode<synchronous>, transform_indices = @transform_5, window_bounds = array<i64: 256, 128>}, {pipeline_mode = #tpu.pipeline_mode<synchronous>, transform_indices = @transform_6, window_bounds = array<i64: 1, 128>}, {pipeline_mode = #tpu.pipeline_mode<synchronous>, transform_indices = @transform_7, window_bounds = array<i64: 1, 128>}, {pipeline_mode = #tpu.pipeline_mode<synchronous>, transform_indices = @transform_8, window_bounds = array<i64: 1, 1>}, {transform_indices = @transform_9, window_bounds = array<i64: 8, 128>}]} {
    %c0 = arith.constant 0 : index
    %c0_0 = arith.constant 0 : index
    %0 = vector.load %arg1[%c0, %c0_0] : memref<8x784xf32, #tpu.memory_space<vmem>>, vector<8x784xf32>
    %1 = arith.truncf %0 : vector<8x784xf32> to vector<8x784xbf16>
    %c0_1 = arith.constant 0 : index
    %c0_2 = arith.constant 0 : index
    %2 = vector.load %arg2[%c0_1, %c0_2] : memref<784x512xbf16, #tpu.memory_space<vmem>>, vector<784x512xbf16>
    %cst = arith.constant dense<0.000000e+00> : vector<8x512xf32>
    %3 = tpu.matmul %1, %2, %cst {dimension_numbers = #tpu.dot_dimension_numbers<[1], [0], [0], [1], [0, 0, 1, 1], [], []>} : vector<8x784xbf16>, vector<784x512xbf16>, vector<8x512xf32> -> vector<8x512xf32>
    %c0_3 = arith.constant 0 : index
    %c0_4 = arith.constant 0 : index
    %4 = vector.load %arg3[%c0_3, %c0_4] : memref<1x512xf32, #tpu.memory_space<vmem>>, vector<1x512xf32>
    %5 = vector.broadcast %4 : vector<1x512xf32> to vector<8x512xf32>
    %6 = arith.addf %3, %5 : vector<8x512xf32>
    %cst_5 = arith.constant 0.000000e+00 : f32
    %7 = vector.broadcast %cst_5 : f32 to vector<8x512xf32>
    %8 = arith.cmpf ogt, %6, %7 : vector<8x512xf32>
    %cst_6 = arith.constant 2.000000e-01 : f32
    %9 = vector.broadcast %cst_6 : f32 to vector<8x512xf32>
    %10 = arith.mulf %9, %6 : vector<8x512xf32>
    %11 = arith.select %8, %6, %10 : vector<8x512xi1>, vector<8x512xf32>
    %12 = arith.truncf %11 : vector<8x512xf32> to vector<8x512xbf16>
    %c0_7 = arith.constant 0 : index
    %c0_8 = arith.constant 0 : index
    %13 = vector.load %arg4[%c0_7, %c0_8] : memref<512x256xbf16, #tpu.memory_space<vmem>>, vector<512x256xbf16>
    %cst_9 = arith.constant dense<0.000000e+00> : vector<8x256xf32>
    %14 = tpu.matmul %12, %13, %cst_9 {dimension_numbers = #tpu.dot_dimension_numbers<[1], [0], [0], [1], [0, 0, 1, 1], [], []>} : vector<8x512xbf16>, vector<512x256xbf16>, vector<8x256xf32> -> vector<8x256xf32>
    %c0_10 = arith.constant 0 : index
    %c0_11 = arith.constant 0 : index
    %15 = vector.load %arg5[%c0_10, %c0_11] : memref<1x256xf32, #tpu.memory_space<vmem>>, vector<1x256xf32>
    %16 = vector.broadcast %15 : vector<1x256xf32> to vector<8x256xf32>
    %17 = arith.addf %14, %16 : vector<8x256xf32>
    %cst_12 = arith.constant 0.000000e+00 : f32
    %18 = vector.broadcast %cst_12 : f32 to vector<8x256xf32>
    %19 = arith.cmpf ogt, %17, %18 : vector<8x256xf32>
    %cst_13 = arith.constant 2.000000e-01 : f32
    %20 = vector.broadcast %cst_13 : f32 to vector<8x256xf32>
    %21 = arith.mulf %20, %17 : vector<8x256xf32>
    %22 = arith.select %19, %17, %21 : vector<8x256xi1>, vector<8x256xf32>
    %23 = arith.truncf %22 : vector<8x256xf32> to vector<8x256xbf16>
    %c0_14 = arith.constant 0 : index
    %c0_15 = arith.constant 0 : index
    %24 = vector.load %arg6[%c0_14, %c0_15] : memref<256x128xbf16, #tpu.memory_space<vmem>>, vector<256x128xbf16>
    %cst_16 = arith.constant dense<0.000000e+00> : vector<8x128xf32>
    %25 = tpu.matmul %23, %24, %cst_16 {dimension_numbers = #tpu.dot_dimension_numbers<[1], [0], [0], [1], [0, 0, 1, 1], [], []>} : vector<8x256xbf16>, vector<256x128xbf16>, vector<8x128xf32> -> vector<8x128xf32>
    %c0_17 = arith.constant 0 : index
    %c0_18 = arith.constant 0 : index
    %26 = vector.load %arg7[%c0_17, %c0_18] : memref<1x128xf32, #tpu.memory_space<vmem>>, vector<1x128xf32>
    %27 = vector.broadcast %26 : vector<1x128xf32> to vector<8x128xf32>
    %28 = arith.addf %25, %27 : vector<8x128xf32>
    %cst_19 = arith.constant 0.000000e+00 : f32
    %29 = vector.broadcast %cst_19 : f32 to vector<8x128xf32>
    %30 = arith.cmpf ogt, %28, %29 : vector<8x128xf32>
    %cst_20 = arith.constant 2.000000e-01 : f32
    %31 = vector.broadcast %cst_20 : f32 to vector<8x128xf32>
    %32 = arith.mulf %31, %28 : vector<8x128xf32>
    %33 = arith.select %30, %28, %32 : vector<8x128xi1>, vector<8x128xf32>
    %c0_21 = arith.constant 0 : index
    %c0_22 = arith.constant 0 : index
    %34 = vector.load %arg8[%c0_21, %c0_22] : memref<1x128xbf16, #tpu.memory_space<vmem>>, vector<1x128xbf16>
    %35 = arith.extf %34 : vector<1x128xbf16> to vector<1x128xf32>
    %36 = vector.broadcast %35 : vector<1x128xf32> to vector<8x128xf32>
    %37 = arith.mulf %33, %36 : vector<8x128xf32>
    %cst_23 = arith.constant dense<0.000000e+00> : vector<8xf32>
    %38 = vector.multi_reduction <add>, %37, %cst_23 [1] : vector<8x128xf32> to vector<8xf32>
    %39 = vector.shape_cast %38 : vector<8xf32> to vector<8x1xf32>
    %c0_24 = arith.constant 0 : index
    %c0_25 = arith.constant 0 : index
    %40 = vector.load %arg9[%c0_24, %c0_25] : memref<1x1xf32, #tpu.memory_space<vmem>>, vector<1x1xf32>
    %41 = vector.broadcast %40 : vector<1x1xf32> to vector<8x1xf32>
    %42 = arith.addf %39, %41 : vector<8x1xf32>
    %43 = vector.shape_cast %42 : vector<8x1xf32> to vector<8x1xf32>
    %44 = vector.broadcast %43 : vector<8x1xf32> to vector<8x128xf32>
    %c0_26 = arith.constant 0 : index
    %c0_27 = arith.constant 0 : index
    %45 = vector.load %arg10[%c0_26, %c0_27] : memref<8x128xf32, #tpu.memory_space<vmem>>, vector<8x128xf32>
    tpu.vector_store %arg10[%c0_26, %c0_27], %44 {strides = array<i32>} : memref<8x128xf32, #tpu.memory_space<vmem>>, vector<8x128xf32>,
    return
  }
  func.func @transform_0(%arg0: i32) -> (i32, i32) {
    %c0_i32 = arith.constant 0 : i32
    %c0_i32_0 = arith.constant 0 : i32
    return %arg0, %c0_i32 : i32, i32
  }
  func.func @transform_1(%arg0: i32) -> (i32, i32) {
    %c0_i32 = arith.constant 0 : i32
    %c0_i32_0 = arith.constant 0 : i32
    %c0_i32_1 = arith.constant 0 : i32
    return %c0_i32, %c0_i32_0 : i32, i32
  }
  func.func @transform_2(%arg0: i32) -> (i32, i32) {
    %c0_i32 = arith.constant 0 : i32
    %c0_i32_0 = arith.constant 0 : i32
    %c0_i32_1 = arith.constant 0 : i32
    return %c0_i32, %c0_i32_0 : i32, i32
  }
  func.func @transform_3(%arg0: i32) -> (i32, i32) {
    %c0_i32 = arith.constant 0 : i32
    %c0_i32_0 = arith.constant 0 : i32
    %c0_i32_1 = arith.constant 0 : i32
    return %c0_i32, %c0_i32_0 : i32, i32
  }
  func.func @transform_4(%arg0: i32) -> (i32, i32) {
    %c0_i32 = arith.constant 0 : i32
    %c0_i32_0 = arith.constant 0 : i32
    %c0_i32_1 = arith.constant 0 : i32
    return %c0_i32, %c0_i32_0 : i32, i32
  }
  func.func @transform_5(%arg0: i32) -> (i32, i32) {
    %c0_i32 = arith.constant 0 : i32
    %c0_i32_0 = arith.constant 0 : i32
    %c0_i32_1 = arith.constant 0 : i32
    return %c0_i32, %c0_i32_0 : i32, i32
  }
  func.func @transform_6(%arg0: i32) -> (i32, i32) {
    %c0_i32 = arith.constant 0 : i32
    %c0_i32_0 = arith.constant 0 : i32
    %c0_i32_1 = arith.constant 0 : i32
    return %c0_i32, %c0_i32_0 : i32, i32
  }
  func.func @transform_7(%arg0: i32) -> (i32, i32) {
    %c0_i32 = arith.constant 0 : i32
    %c0_i32_0 = arith.constant 0 : i32
    %c0_i32_1 = arith.constant 0 : i32
    return %c0_i32, %c0_i32_0 : i32, i32
  }
  func.func @transform_8(%arg0: i32) -> (i32, i32) {
    %c0_i32 = arith.constant 0 : i32
    %c0_i32_0 = arith.constant 0 : i32
    %c0_i32_1 = arith.constant 0 : i32
    return %c0_i32, %c0_i32_0 : i32, i32
  }
  func.func @transform_9(%arg0: i32) -> (i32, i32) {
    %c0_i32 = arith.constant 0 : i32
    %c0_i32_0 = arith.constant 0 : i32
    return %arg0, %c0_i32 : i32, i32
  }
}

</mosaic_0001>

<llo_original>
// kernel: tpu_custom_call.1
$region0: #{tpu_custom_call.1}
  #allocation0 [shape = 'u32[]', space=smem, size = 0x4, offset = 0x4, fixed_abs, tag = 'smem constant byte address 0x4 - core index']
  #allocation1 [shape = 'u32[144,128]{1,0:T(1,128)}', space=vmem, size = 0x12000, scoped, tag = 'internal scratch']
  #allocation2 [shape = 'f32[1,1]{1,0:T(1,128)S(1)}', space=vmem, size = 0x200, scoped, tag = 'scoped memory for tpu_custom_call.1']
  %s0 = inlined_call_operand.hbm [shape: f32[8,784], index: 0, kind: input, shape index: {}]
  %s1 = inlined_call_operand.hbm [shape: bf16[784,512], index: 1, kind: input, shape index: {}]
  %s2 = inlined_call_operand.vmem [shape: f32[1,512], index: 2, kind: input, shape index: {}]
  %s3 = inlined_call_operand.hbm [shape: bf16[512,256], index: 3, kind: input, shape index: {}]
  %s4 = inlined_call_operand.vmem [shape: f32[1,256], index: 4, kind: input, shape index: {}]
  %s5 = inlined_call_operand.hbm [shape: bf16[256,128], index: 5, kind: input, shape index: {}]
  %s6 = inlined_call_operand.vmem [shape: f32[1,128], index: 6, kind: input, shape index: {}]
  %s7 = inlined_call_operand.vmem [shape: bf16[1,128], index: 7, kind: input, shape index: {}]
  %s8 = inlined_call_operand.<no memory space> [shape: f32[1,1], index: 8, kind: input, shape index: {}]
  %s9 = inlined_call_operand.hbm [shape: f32[8,128], index: 9, kind: output, shape index: {}]
  %s10 = sld [smem:[#allocation0]]
  $region62: #{tpu_custom_call.1} parent=0
    _
  %s12 = ssub.s32 1, %s10
  %s13 = scalar_select 0, %s12, %s10
  %v14 = vstv %s8
  %15 = vst [vmem:[#allocation2] sm:$0x1] %v14
  $region1: #{tpu_custom_call.1} parent=0
    #allocation3 [shape = 'u8[28672]{0}', space=vmem, size = 0x7000, scoped, tag = 'input window, operand 0, single buffered']
    #allocation4 [shape = 's32[1]{0}', space=sflag, size = 0x4, scoped, tag = 'scoped memory for tpu_custom_call.1']
    #allocation5 [shape = 's32[1]{0}', space=sflag, size = 0x4, scoped, tag = 'scoped memory for tpu_custom_call.1']
    #allocation6 [shape = 'u8[802816]{0}', space=vmem, size = 0xc4000, scoped, tag = 'input window, operand 1, single buffered']
    #allocation7 [shape = 's32[1]{0}', space=sflag, size = 0x4, scoped, tag = 'scoped memory for tpu_custom_call.1']
    #allocation8 [shape = 'u8[262144]{0}', space=vmem, size = 0x40000, scoped, tag = 'input window, operand 3, single buffered']
    #allocation9 [shape = 'u8[65536]{0}', space=vmem, size = 0x10000, scoped, tag = 'input window, operand 5, single buffered']
    #allocation10 [shape = 's32[1]{0}', space=sflag, size = 0x4, scoped, tag = 'scoped memory for tpu_custom_call.1']
    #allocation11 [shape = 'u8[4096]{0}', space=vmem, size = 0x1000, scoped, tag = 'output window, operand 0, single buffered']
    %16 = vsyncpa [#allocation4], 0
    %17 = vsyncpa [#allocation7], 0
    %18 = vsyncpa [#allocation10], 0
    %19 = vsyncpa [#allocation5], 0
    // Predicated region
    $region2: #{tpu_custom_call.1} parent=1 // pred_check
      _
    $region3: #{tpu_custom_call.1} parent=1 // pred_check_branch
      %21 = sbr.rel (0) target = $region5
    $region4: #{tpu_custom_call.1} parent=1 // pred_region
      %s23 = ssub.s32 896, 896
      %24 = vsyncadd [#allocation4], %s23
      %s26 = sshll.u32 [#allocation3], 4
      %s27 = int_to_ptr.vmem [resolvable:$true] %s26
      %29 = dma.hbm_to_vmem [thread:$0]  %s0, 896, %s27, [#allocation4]
    $region5: #{tpu_custom_call.1} parent=1 // pred_fallthru
      _
    // Predicated region
    $region6: #{tpu_custom_call.1} parent=1 // pred_check
      _
    $region7: #{tpu_custom_call.1} parent=1 // pred_check_branch
      %31 = sbr.rel (0) target = $region9
    $region8: #{tpu_custom_call.1} parent=1 // pred_region
      %s33 = ssub.s32 25088, 25088
      %34 = vsyncadd [#allocation7], %s33
      %s35 = sshll.u32 [#allocation6], 4
      %s36 = int_to_ptr.vmem [resolvable:$true] %s35
      %41 = dma.hbm_to_vmem [thread:$0]  %s1, 25088, %s36, [#allocation7], 256, 256, 16
    $region9: #{tpu_custom_call.1} parent=1 // pred_fallthru
      _
    // Predicated region
    $region10: #{tpu_custom_call.1} parent=1 // pred_check
      _
    $region11: #{tpu_custom_call.1} parent=1 // pred_check_branch
      %43 = sbr.rel (0) target = $region13
    $region12: #{tpu_custom_call.1} parent=1 // pred_region
      _
    $region13: #{tpu_custom_call.1} parent=1 // pred_fallthru
      _
    // Predicated region
    $region14: #{tpu_custom_call.1} parent=1 // pred_check
      _
    $region15: #{tpu_custom_call.1} parent=1 // pred_check_branch
      %45 = sbr.rel (0) target = $region17
    $region16: #{tpu_custom_call.1} parent=1 // pred_region
      %s47 = ssub.s32 8192, 8192
      %48 = vsyncadd [#allocation7], %s47
      %s49 = sshll.u32 [#allocation8], 4
      %s50 = int_to_ptr.vmem [resolvable:$true] %s49
      %55 = dma.hbm_to_vmem [thread:$0]  %s3, 8192, %s50, [#allocation7], 128, 128, 8
    $region17: #{tpu_custom_call.1} parent=1 // pred_fallthru
      _
    // Predicated region
    $region18: #{tpu_custom_call.1} parent=1 // pred_check
      _
    $region19: #{tpu_custom_call.1} parent=1 // pred_check_branch
      %57 = sbr.rel (0) target = $region21
    $region20: #{tpu_custom_call.1} parent=1 // pred_region
      _
    $region21: #{tpu_custom_call.1} parent=1 // pred_fallthru
      _
    // Predicated region
    $region22: #{tpu_custom_call.1} parent=1 // pred_check
      _
    $region23: #{tpu_custom_call.1} parent=1 // pred_check_branch
      %59 = sbr.rel (0) target = $region25
    $region24: #{tpu_custom_call.1} parent=1 // pred_region
      %s61 = ssub.s32 2048, 2048
      %62 = vsyncadd [#allocation10], %s61
      %s63 = sshll.u32 [#allocation9], 4
      %s64 = int_to_ptr.vmem [resolvable:$true] %s63
      %69 = dma.hbm_to_vmem [thread:$0]  %s5, 2048, %s64, [#allocation10], 64, 64, 4
    $region25: #{tpu_custom_call.1} parent=1 // pred_fallthru
      _
    // Predicated region
    $region26: #{tpu_custom_call.1} parent=1 // pred_check
      _
    $region27: #{tpu_custom_call.1} parent=1 // pred_check_branch
      %71 = sbr.rel (0) target = $region29
    $region28: #{tpu_custom_call.1} parent=1 // pred_region
      _
    $region29: #{tpu_custom_call.1} parent=1 // pred_fallthru
      _
    // Predicated region
    $region30: #{tpu_custom_call.1} parent=1 // pred_check
      _
    $region31: #{tpu_custom_call.1} parent=1 // pred_check_branch
      %73 = sbr.rel (0) target = $region33
    $region32: #{tpu_custom_call.1} parent=1 // pred_region
      _
    $region33: #{tpu_custom_call.1} parent=1 // pred_fallthru
      _
    // Predicated region
    $region34: #{tpu_custom_call.1} parent=1 // pred_check
      _
    $region35: #{tpu_custom_call.1} parent=1 // pred_check_branch
      %75 = sbr.rel (0) target = $region37
    $region36: #{tpu_custom_call.1} parent=1 // pred_region
      _
    $region37: #{tpu_custom_call.1} parent=1 // pred_fallthru
      _
    // Predicated region
    $region38: #{tpu_custom_call.1} parent=1 // pred_check
      _
    $region39: #{tpu_custom_call.1} parent=1 // pred_check_branch
      %77 = sbr.rel (0) target = $region41
    $region40: #{tpu_custom_call.1} parent=1 // pred_region
      %78 = dma.done [#allocation4], 896
    $region41: #{tpu_custom_call.1} parent=1 // pred_fallthru
      _
    // Predicated region
    $region42: #{tpu_custom_call.1} parent=1 // pred_check
      _
    $region43: #{tpu_custom_call.1} parent=1 // pred_check_branch
      %80 = sbr.rel (0) target = $region45
    $region44: #{tpu_custom_call.1} parent=1 // pred_region
      %81 = dma.done [#allocation7], 25088
    $region45: #{tpu_custom_call.1} parent=1 // pred_fallthru
      _
    // Predicated region
    $region46: #{tpu_custom_call.1} parent=1 // pred_check
      _
    $region47: #{tpu_custom_call.1} parent=1 // pred_check_branch
      %83 = sbr.rel (0) target = $region49
    $region48: #{tpu_custom_call.1} parent=1 // pred_region
      %84 = dma.done [#allocation7], 8192
    $region49: #{tpu_custom_call.1} parent=1 // pred_fallthru
      _
    // Predicated region
    $region50: #{tpu_custom_call.1} parent=1 // pred_check
      _
    $region51: #{tpu_custom_call.1} parent=1 // pred_check_branch
      %86 = sbr.rel (0) target = $region53
    $region52: #{tpu_custom_call.1} parent=1 // pred_region
      %87 = dma.done [#allocation10], 2048
    $region53: #{tpu_custom_call.1} parent=1 // pred_fallthru
      _
    %v89 = vld [vmem:[#allocation3] sm:$0xff]
    %v90 = vld [vmem:[#allocation3 + $0x8] sm:$0xff]
    %v91 = vld [vmem:[#allocation3 + $0x10] sm:$0xff]
    %v92 = vld [vmem:[#allocation3 + $0x18] sm:$0xff]
    %v93 = vld [vmem:[#allocation3 + $0x20] sm:$0xff]
    %v94 = vld [vmem:[#allocation3 + $0x28] sm:$0xff]
    %v95 = vld [vmem:[#allocation3 + $0x30] sm:$0xff]
    %v96 = vpack.c.bf16 %v89, %v89
    %v97 = vpack.c.bf16 %v90, %v90
    %v98 = vpack.c.bf16 %v91, %v91
    %v99 = vpack.c.bf16 %v92, %v92
    %v100 = vpack.c.bf16 %v93, %v93
    %v101 = vpack.c.bf16 %v94, %v94
    %v102 = vpack.c.bf16 %v95, %v95
    %v103 = vld [vmem:[#allocation6] sm:$0xff]
    %v104 = vld [vmem:[#allocation6 + $0x8] sm:$0xff]
    %v105 = vld [vmem:[#allocation6 + $0x10] sm:$0xff]
    %v106 = vld [vmem:[#allocation6 + $0x18] sm:$0xff]
    %v107 = vld [vmem:[#allocation6 + $0x20] sm:$0xff]
    %v108 = vld [vmem:[#allocation6 + $0x28] sm:$0xff]
    %v109 = vld [vmem:[#allocation6 + $0x30] sm:$0xff]
    %v110 = vld [vmem:[#allocation6 + $0x38] sm:$0xff]
    %v111 = vld [vmem:[#allocation6 + $0x40] sm:$0xff]
    %v112 = vld [vmem:[#allocation6 + $0x48] sm:$0xff]
    %v113 = vld [vmem:[#allocation6 + $0x50] sm:$0xff]
    %v114 = vld [vmem:[#allocation6 + $0x58] sm:$0xff]
    %v115 = vld [vmem:[#allocation6 + $0x60] sm:$0xff]
    %v116 = vld [vmem:[#allocation6 + $0x68] sm:$0xff]
    %v117 = vld [vmem:[#allocation6 + $0x70] sm:$0xff]
    %v118 = vld [vmem:[#allocation6 + $0x78] sm:$0xff]
    %v119 = vld [vmem:[#allocation6 + $0x80] sm:$0xff]
    %v120 = vld [vmem:[#allocation6 + $0x88] sm:$0xff]
    %v121 = vld [vmem:[#allocation6 + $0x90] sm:$0xff]
    %v122 = vld [vmem:[#allocation6 + $0x98] sm:$0xff]
    %v123 = vld [vmem:[#allocation6 + $0xa0] sm:$0xff]
    %v124 = vld [vmem:[#allocation6 + $0xa8] sm:$0xff]
    %v125 = vld [vmem:[#allocation6 + $0xb0] sm:$0xff]
    %v126 = vld [vmem:[#allocation6 + $0xb8] sm:$0xff]
    %v127 = vld [vmem:[#allocation6 + $0xc0] sm:$0xff]
    %v128 = vld [vmem:[#allocation6 + $0xc8] sm:$0xff]
    %v129 = vld [vmem:[#allocation6 + $0xd0] sm:$0xff]
    %v130 = vld [vmem:[#allocation6 + $0xd8] sm:$0xff]
    %v131 = vld [vmem:[#allocation6 + $0xe0] sm:$0xff]
    %v132 = vld [vmem:[#allocation6 + $0xe8] sm:$0xff]
    %v133 = vld [vmem:[#allocation6 + $0xf0] sm:$0xff]
    %v134 = vld [vmem:[#allocation6 + $0xf8] sm:$0xff]
    %v135 = vld [vmem:[#allocation6 + $0x100] sm:$0xff]
    %v136 = vld [vmem:[#allocation6 + $0x108] sm:$0xff]
    %v137 = vld [vmem:[#allocation6 + $0x110] sm:$0xff]
    %v138 = vld [vmem:[#allocation6 + $0x118] sm:$0xff]
    %v139 = vld [vmem:[#allocation6 + $0x120] sm:$0xff]
    %v140 = vld [vmem:[#allocation6 + $0x128] sm:$0xff]
    %v141 = vld [vmem:[#allocation6 + $0x130] sm:$0xff]
    %v142 = vld [vmem:[#allocation6 + $0x138] sm:$0xff]
    %v143 = vld [vmem:[#allocation6 + $0x140] sm:$0xff]
    %v144 = vld [vmem:[#allocation6 + $0x148] sm:$0xff]
    %v145 = vld [vmem:[#allocation6 + $0x150] sm:$0xff]
    %v146 = vld [vmem:[#allocation6 + $0x158] sm:$0xff]
    %v147 = vld [vmem:[#allocation6 + $0x160] sm:$0xff]
    %v148 = vld [vmem:[#allocation6 + $0x168] sm:$0xff]
    %v149 = vld [vmem:[#allocation6 + $0x170] sm:$0xff]
    %v150 = vld [vmem:[#allocation6 + $0x178] sm:$0xff]
    %v151 = vld [vmem:[#allocation6 + $0x180] sm:$0xff]
    %v152 = vld [vmem:[#allocation6 + $0x188] sm:$0xff]
    %v153 = vld [vmem:[#allocation6 + $0x190] sm:$0xff]
    %v154 = vld [vmem:[#allocation6 + $0x198] sm:$0xff]
    %v155 = vld [vmem:[#allocation6 + $0x1a0] sm:$0xff]
    %v156 = vld [vmem:[#allocation6 + $0x1a8] sm:$0xff]
    %v157 = vld [vmem:[#allocation6 + $0x1b0] sm:$0xff]
    %v158 = vld [vmem:[#allocation6 + $0x1b8] sm:$0xff]
    %v159 = vld [vmem:[#allocation6 + $0x1c0] sm:$0xff]
    %v160 = vld [vmem:[#allocation6 + $0x1c8] sm:$0xff]
    %v161 = vld [vmem:[#allocation6 + $0x1d0] sm:$0xff]
    %v162 = vld [vmem:[#allocation6 + $0x1d8] sm:$0xff]
    %v163 = vld [vmem:[#allocation6 + $0x1e0] sm:$0xff]
    %v164 = vld [vmem:[#allocation6 + $0x1e8] sm:$0xff]
    %v165 = vld [vmem:[#allocation6 + $0x1f0] sm:$0xff]
    %v166 = vld [vmem:[#allocation6 + $0x1f8] sm:$0xff]
    %v167 = vld [vmem:[#allocation6 + $0x200] sm:$0xff]
    %v168 = vld [vmem:[#allocation6 + $0x208] sm:$0xff]
    %v169 = vld [vmem:[#allocation6 + $0x210] sm:$0xff]
    %v170 = vld [vmem:[#allocation6 + $0x218] sm:$0xff]
    %v171 = vld [vmem:[#allocation6 + $0x220] sm:$0xff]
    %v172 = vld [vmem:[#allocation6 + $0x228] sm:$0xff]
    %v173 = vld [vmem:[#allocation6 + $0x230] sm:$0xff]
    %v174 = vld [vmem:[#allocation6 + $0x238] sm:$0xff]
    %v175 = vld [vmem:[#allocation6 + $0x240] sm:$0xff]
    %v176 = vld [vmem:[#allocation6 + $0x248] sm:$0xff]
    %v177 = vld [vmem:[#allocation6 + $0x250] sm:$0xff]
    %v178 = vld [vmem:[#allocation6 + $0x258] sm:$0xff]
    %v179 = vld [vmem:[#allocation6 + $0x260] sm:$0xff]
    %v180 = vld [vmem:[#allocation6 + $0x268] sm:$0xff]
    %v181 = vld [vmem:[#allocation6 + $0x270] sm:$0xff]
    %v182 = vld [vmem:[#allocation6 + $0x278] sm:$0xff]
    %v183 = vld [vmem:[#allocation6 + $0x280] sm:$0xff]
    %v184 = vld [vmem:[#allocation6 + $0x288] sm:$0xff]
    %v185 = vld [vmem:[#allocation6 + $0x290] sm:$0xff]
    %v186 = vld [vmem:[#allocation6 + $0x298] sm:$0xff]
    %v187 = vld [vmem:[#allocation6 + $0x2a0] sm:$0xff]
    %v188 = vld [vmem:[#allocation6 + $0x2a8] sm:$0xff]
    %v189 = vld [vmem:[#allocation6 + $0x2b0] sm:$0xff]
    %v190 = vld [vmem:[#allocation6 + $0x2b8] sm:$0xff]
    %v191 = vld [vmem:[#allocation6 + $0x2c0] sm:$0xff]
    %v192 = vld [vmem:[#allocation6 + $0x2c8] sm:$0xff]
    %v193 = vld [vmem:[#allocation6 + $0x2d0] sm:$0xff]
    %v194 = vld [vmem:[#allocation6 + $0x2d8] sm:$0xff]
    %v195 = vld [vmem:[#allocation6 + $0x2e0] sm:$0xff]
    %v196 = vld [vmem:[#allocation6 + $0x2e8] sm:$0xff]
    %v197 = vld [vmem:[#allocation6 + $0x2f0] sm:$0xff]
    %v198 = vld [vmem:[#allocation6 + $0x2f8] sm:$0xff]
    %v199 = vld [vmem:[#allocation6 + $0x300] sm:$0xff]
    %v200 = vld [vmem:[#allocation6 + $0x308] sm:$0xff]
    %v201 = vld [vmem:[#allocation6 + $0x310] sm:$0xff]
    %v202 = vld [vmem:[#allocation6 + $0x318] sm:$0xff]
    %v203 = vld [vmem:[#allocation6 + $0x320] sm:$0xff]
    %v204 = vld [vmem:[#allocation6 + $0x328] sm:$0xff]
    %v205 = vld [vmem:[#allocation6 + $0x330] sm:$0xff]
    %v206 = vld [vmem:[#allocation6 + $0x338] sm:$0xff]
    %v207 = vld [vmem:[#allocation6 + $0x340] sm:$0xff]
    %v208 = vld [vmem:[#allocation6 + $0x348] sm:$0xff]
    %v209 = vld [vmem:[#allocation6 + $0x350] sm:$0xff]
    %v210 = vld [vmem:[#allocation6 + $0x358] sm:$0xff]
    %v211 = vld [vmem:[#allocation6 + $0x360] sm:$0xff]
    %v212 = vld [vmem:[#allocation6 + $0x368] sm:$0xff]
    %v213 = vld [vmem:[#allocation6 + $0x370] sm:$0xff]
    %v214 = vld [vmem:[#allocation6 + $0x378] sm:$0xff]
    %v215 = vld [vmem:[#allocation6 + $0x380] sm:$0xff]
    %v216 = vld [vmem:[#allocation6 + $0x388] sm:$0xff]
    %v217 = vld [vmem:[#allocation6 + $0x390] sm:$0xff]
    %v218 = vld [vmem:[#allocation6 + $0x398] sm:$0xff]
    %v219 = vld [vmem:[#allocation6 + $0x3a0] sm:$0xff]
    %v220 = vld [vmem:[#allocation6 + $0x3a8] sm:$0xff]
    %v221 = vld [vmem:[#allocation6 + $0x3b0] sm:$0xff]
    %v222 = vld [vmem:[#allocation6 + $0x3b8] sm:$0xff]
    %v223 = vld [vmem:[#allocation6 + $0x3c0] sm:$0xff]
    %v224 = vld [vmem:[#allocation6 + $0x3c8] sm:$0xff]
    %v225 = vld [vmem:[#allocation6 + $0x3d0] sm:$0xff]
    %v226 = vld [vmem:[#allocation6 + $0x3d8] sm:$0xff]
    %v227 = vld [vmem:[#allocation6 + $0x3e0] sm:$0xff]
    %v228 = vld [vmem:[#allocation6 + $0x3e8] sm:$0xff]
    %v229 = vld [vmem:[#allocation6 + $0x3f0] sm:$0xff]
    %v230 = vld [vmem:[#allocation6 + $0x3f8] sm:$0xff]
    %v231 = vld [vmem:[#allocation6 + $0x400] sm:$0xff]
    %v232 = vld [vmem:[#allocation6 + $0x408] sm:$0xff]
    %v233 = vld [vmem:[#allocation6 + $0x410] sm:$0xff]
    %v234 = vld [vmem:[#allocation6 + $0x418] sm:$0xff]
    %v235 = vld [vmem:[#allocation6 + $0x420] sm:$0xff]
    %v236 = vld [vmem:[#allocation6 + $0x428] sm:$0xff]
    %v237 = vld [vmem:[#allocation6 + $0x430] sm:$0xff]
    %v238 = vld [vmem:[#allocation6 + $0x438] sm:$0xff]
    %v239 = vld [vmem:[#allocation6 + $0x440] sm:$0xff]
    %v240 = vld [vmem:[#allocation6 + $0x448] sm:$0xff]
    %v241 = vld [vmem:[#allocation6 + $0x450] sm:$0xff]
    %v242 = vld [vmem:[#allocation6 + $0x458] sm:$0xff]
    %v243 = vld [vmem:[#allocation6 + $0x460] sm:$0xff]
    %v244 = vld [vmem:[#allocation6 + $0x468] sm:$0xff]
    %v245 = vld [vmem:[#allocation6 + $0x470] sm:$0xff]
    %v246 = vld [vmem:[#allocation6 + $0x478] sm:$0xff]
    %v247 = vld [vmem:[#allocation6 + $0x480] sm:$0xff]
    %v248 = vld [vmem:[#allocation6 + $0x488] sm:$0xff]
    %v249 = vld [vmem:[#allocation6 + $0x490] sm:$0xff]
    %v250 = vld [vmem:[#allocation6 + $0x498] sm:$0xff]
    %v251 = vld [vmem:[#allocation6 + $0x4a0] sm:$0xff]
    %v252 = vld [vmem:[#allocation6 + $0x4a8] sm:$0xff]
    %v253 = vld [vmem:[#allocation6 + $0x4b0] sm:$0xff]
    %v254 = vld [vmem:[#allocation6 + $0x4b8] sm:$0xff]
    %v255 = vld [vmem:[#allocation6 + $0x4c0] sm:$0xff]
    %v256 = vld [vmem:[#allocation6 + $0x4c8] sm:$0xff]
    %v257 = vld [vmem:[#allocation6 + $0x4d0] sm:$0xff]
    %v258 = vld [vmem:[#allocation6 + $0x4d8] sm:$0xff]
    %v259 = vld [vmem:[#allocation6 + $0x4e0] sm:$0xff]
    %v260 = vld [vmem:[#allocation6 + $0x4e8] sm:$0xff]
    %v261 = vld [vmem:[#allocation6 + $0x4f0] sm:$0xff]
    %v262 = vld [vmem:[#allocation6 + $0x4f8] sm:$0xff]
    %v263 = vld [vmem:[#allocation6 + $0x500] sm:$0xff]
    %v264 = vld [vmem:[#allocation6 + $0x508] sm:$0xff]
    %v265 = vld [vmem:[#allocation6 + $0x510] sm:$0xff]
    %v266 = vld [vmem:[#allocation6 + $0x518] sm:$0xff]
    %v267 = vld [vmem:[#allocation6 + $0x520] sm:$0xff]
    %v268 = vld [vmem:[#allocation6 + $0x528] sm:$0xff]
    %v269 = vld [vmem:[#allocation6 + $0x530] sm:$0xff]
    %v270 = vld [vmem:[#allocation6 + $0x538] sm:$0xff]
    %v271 = vld [vmem:[#allocation6 + $0x540] sm:$0xff]
    %v272 = vld [vmem:[#allocation6 + $0x548] sm:$0xff]
    %v273 = vld [vmem:[#allocation6 + $0x550] sm:$0xff]
    %v274 = vld [vmem:[#allocation6 + $0x558] sm:$0xff]
    %v275 = vld [vmem:[#allocation6 + $0x560] sm:$0xff]
    %v276 = vld [vmem:[#allocation6 + $0x568] sm:$0xff]
    %v277 = vld [vmem:[#allocation6 + $0x570] sm:$0xff]
    %v278 = vld [vmem:[#allocation6 + $0x578] sm:$0xff]
    %v279 = vld [vmem:[#allocation6 + $0x580] sm:$0xff]
    %v280 = vld [vmem:[#allocation6 + $0x588] sm:$0xff]
    %v281 = vld [vmem:[#allocation6 + $0x590] sm:$0xff]
    %v282 = vld [vmem:[#allocation6 + $0x598] sm:$0xff]
    %v283 = vld [vmem:[#allocation6 + $0x5a0] sm:$0xff]
    %v284 = vld [vmem:[#allocation6 + $0x5a8] sm:$0xff]
    %v285 = vld [vmem:[#allocation6 + $0x5b0] sm:$0xff]
    %v286 = vld [vmem:[#allocation6 + $0x5b8] sm:$0xff]
    %v287 = vld [vmem:[#allocation6 + $0x5c0] sm:$0xff]
    %v288 = vld [vmem:[#allocation6 + $0x5c8] sm:$0xff]
    %v289 = vld [vmem:[#allocation6 + $0x5d0] sm:$0xff]
    %v290 = vld [vmem:[#allocation6 + $0x5d8] sm:$0xff]
    %v291 = vld [vmem:[#allocation6 + $0x5e0] sm:$0xff]
    %v292 = vld [vmem:[#allocation6 + $0x5e8] sm:$0xff]
    %v293 = vld [vmem:[#allocation6 + $0x5f0] sm:$0xff]
    %v294 = vld [vmem:[#allocation6 + $0x5f8] sm:$0xff]
    %v295 = vld [vmem:[#allocation6 + $0x600] sm:$0xff]
    %v296 = vld [vmem:[#allocation6 + $0x608] sm:$0xff]
    %v297 = vld [vmem:[#allocation6 + $0x610] sm:$0xff]
    %v298 = vld [vmem:[#allocation6 + $0x618] sm:$0xff]
    %v299 = vld [vmem:[%s2] sm:$0xf]
    %v301 = vlaneseq
    %v302 = vshrl.u32 %v301, 7
    %v303 = vsub.s32 0, %v302
    %v304 = vrot.slane %v299, %v303
    %v305 = vlaneseq
    %v306 = vshrl.u32 %v305, 7
    %v307 = vsub.s32 1, %v306
    %v308 = vrot.slane %v299, %v307
    %v309 = vlaneseq
    %v310 = vshrl.u32 %v309, 7
    %v311 = vsub.s32 2, %v310
    %v312 = vrot.slane %v299, %v311
    %v313 = vlaneseq
    %v314 = vshrl.u32 %v313, 7
    %v315 = vsub.s32 3, %v314
    %v316 = vrot.slane %v299, %v315
    %v517 = vunpack.c.l.b16 %v103
    %v518 = vunpack.c.h.b16 %v103
    %v519 = vunpack.c.l.b16 %v104
    %v520 = vunpack.c.h.b16 %v104
    %v521 = vunpack.c.l.b16 %v105
    %v522 = vunpack.c.h.b16 %v105
    %v523 = vunpack.c.l.b16 %v106
    %v524 = vunpack.c.h.b16 %v106
    %v525 = vunpack.c.l.b16 %v107
    %v526 = vunpack.c.h.b16 %v107
    %v527 = vunpack.c.l.b16 %v108
    %v528 = vunpack.c.h.b16 %v108
    %v529 = vunpack.c.l.b16 %v109
    %v530 = vunpack.c.h.b16 %v109
    %v531 = vunpack.c.l.b16 %v110
    %v532 = vunpack.c.h.b16 %v110
    %v533 = vunpack.c.l.b16 %v111
    %v534 = vunpack.c.h.b16 %v111
    %v535 = vunpack.c.l.b16 %v112
    %v536 = vunpack.c.h.b16 %v112
    %v537 = vunpack.c.l.b16 %v113
    %v538 = vunpack.c.h.b16 %v113
    %v539 = vunpack.c.l.b16 %v114
    %v540 = vunpack.c.h.b16 %v114
    %v541 = vunpack.c.l.b16 %v115
    %v542 = vunpack.c.h.b16 %v115
    %v543 = vunpack.c.l.b16 %v116
    %v544 = vunpack.c.h.b16 %v116
    %v545 = vunpack.c.l.b16 %v117
    %v546 = vunpack.c.h.b16 %v117
    %v547 = vunpack.c.l.b16 %v118
    %v548 = vunpack.c.h.b16 %v118
    %v549 = vunpack.c.l.b16 %v119
    %v550 = vunpack.c.h.b16 %v119
    %v551 = vunpack.c.l.b16 %v120
    %v552 = vunpack.c.h.b16 %v120
    %v553 = vunpack.c.l.b16 %v121
    %v554 = vunpack.c.h.b16 %v121
    %v555 = vunpack.c.l.b16 %v122
    %v556 = vunpack.c.h.b16 %v122
    %v557 = vunpack.c.l.b16 %v123
    %v558 = vunpack.c.h.b16 %v123
    %v559 = vunpack.c.l.b16 %v124
    %v560 = vunpack.c.h.b16 %v124
    %v561 = vunpack.c.l.b16 %v125
    %v562 = vunpack.c.h.b16 %v125
    %v563 = vunpack.c.l.b16 %v126
    %v564 = vunpack.c.h.b16 %v126
    %v565 = vunpack.c.l.b16 %v127
    %v566 = vunpack.c.h.b16 %v127
    %v567 = vunpack.c.l.b16 %v128
    %v568 = vunpack.c.h.b16 %v128
    %v569 = vunpack.c.l.b16 %v129
    %v570 = vunpack.c.h.b16 %v129
    %v571 = vunpack.c.l.b16 %v130
    %v572 = vunpack.c.h.b16 %v130
    %v573 = vunpack.c.l.b16 %v131
    %v574 = vunpack.c.h.b16 %v131
    %v575 = vunpack.c.l.b16 %v132
    %v576 = vunpack.c.h.b16 %v132
    %v577 = vunpack.c.l.b16 %v133
    %v578 = vunpack.c.h.b16 %v133
    %v579 = vunpack.c.l.b16 %v134
    %v580 = vunpack.c.h.b16 %v134
    %v581 = vunpack.c.l.b16 %v135
    %v582 = vunpack.c.h.b16 %v135
    %v583 = vunpack.c.l.b16 %v136
    %v584 = vunpack.c.h.b16 %v136
    %v585 = vunpack.c.l.b16 %v137
    %v586 = vunpack.c.h.b16 %v137
    %v587 = vunpack.c.l.b16 %v138
    %v588 = vunpack.c.h.b16 %v138
    %v589 = vunpack.c.l.b16 %v139
    %v590 = vunpack.c.h.b16 %v139
    %v591 = vunpack.c.l.b16 %v140
    %v592 = vunpack.c.h.b16 %v140
    %v593 = vunpack.c.l.b16 %v141
    %v594 = vunpack.c.h.b16 %v141
    %v595 = vunpack.c.l.b16 %v142
    %v596 = vunpack.c.h.b16 %v142
    %v597 = vunpack.c.l.b16 %v143
    %v598 = vunpack.c.h.b16 %v143
    %v599 = vunpack.c.l.b16 %v144
    %v600 = vunpack.c.h.b16 %v144
    %v601 = vunpack.c.l.b16 %v145
    %v602 = vunpack.c.h.b16 %v145
    %v603 = vunpack.c.l.b16 %v146
    %v604 = vunpack.c.h.b16 %v146
    %v605 = vunpack.c.l.b16 %v147
    %v606 = vunpack.c.h.b16 %v147
    %v607 = vunpack.c.l.b16 %v148
    %v608 = vunpack.c.h.b16 %v148
    %v609 = vunpack.c.l.b16 %v149
    %v610 = vunpack.c.h.b16 %v149
    %v611 = vunpack.c.l.b16 %v150
    %v612 = vunpack.c.h.b16 %v150
    %v613 = vunpack.c.l.b16 %v151
    %v614 = vunpack.c.h.b16 %v151
    %v615 = vunpack.c.l.b16 %v152
    %v616 = vunpack.c.h.b16 %v152
    %v617 = vunpack.c.l.b16 %v153
    %v618 = vunpack.c.h.b16 %v153
    %v619 = vunpack.c.l.b16 %v154
    %v620 = vunpack.c.h.b16 %v154
    %v621 = vunpack.c.l.b16 %v155
    %v622 = vunpack.c.h.b16 %v155
    %v623 = vunpack.c.l.b16 %v156
    %v624 = vunpack.c.h.b16 %v156
    %v625 = vunpack.c.l.b16 %v157
    %v626 = vunpack.c.h.b16 %v157
    %v627 = vunpack.c.l.b16 %v158
    %v628 = vunpack.c.h.b16 %v158
    %v629 = vunpack.c.l.b16 %v159
    %v630 = vunpack.c.h.b16 %v159
    %v631 = vunpack.c.l.b16 %v160
    %v632 = vunpack.c.h.b16 %v160
    %v633 = vunpack.c.l.b16 %v161
    %v634 = vunpack.c.h.b16 %v161
    %v635 = vunpack.c.l.b16 %v162
    %v636 = vunpack.c.h.b16 %v162
    %v637 = vunpack.c.l.b16 %v163
    %v638 = vunpack.c.h.b16 %v163
    %v639 = vunpack.c.l.b16 %v164
    %v640 = vunpack.c.h.b16 %v164
    %v641 = vunpack.c.l.b16 %v165
    %v642 = vunpack.c.h.b16 %v165
    %v643 = vunpack.c.l.b16 %v166
    %v644 = vunpack.c.h.b16 %v166
    %v645 = vunpack.c.l.b16 %v167
    %v646 = vunpack.c.h.b16 %v167
    %v647 = vunpack.c.l.b16 %v168
    %v648 = vunpack.c.h.b16 %v168
    %v649 = vunpack.c.l.b16 %v169
    %v650 = vunpack.c.h.b16 %v169
    %v651 = vunpack.c.l.b16 %v170
    %v652 = vunpack.c.h.b16 %v170
    %v653 = vunpack.c.l.b16 %v171
    %v654 = vunpack.c.h.b16 %v171
    %v655 = vunpack.c.l.b16 %v172
    %v656 = vunpack.c.h.b16 %v172
    %v657 = vunpack.c.l.b16 %v173
    %v658 = vunpack.c.h.b16 %v173
    %v659 = vunpack.c.l.b16 %v174
    %v660 = vunpack.c.h.b16 %v174
    %v661 = vunpack.c.l.b16 %v175
    %v662 = vunpack.c.h.b16 %v175
    %v663 = vunpack.c.l.b16 %v176
    %v664 = vunpack.c.h.b16 %v176
    %v665 = vunpack.c.l.b16 %v177
    %v666 = vunpack.c.h.b16 %v177
    %v667 = vunpack.c.l.b16 %v178
    %v668 = vunpack.c.h.b16 %v178
    %v669 = vunpack.c.l.b16 %v179
    %v670 = vunpack.c.h.b16 %v179
    %v671 = vunpack.c.l.b16 %v180
    %v672 = vunpack.c.h.b16 %v180
    %v673 = vunpack.c.l.b16 %v181
    %v674 = vunpack.c.h.b16 %v181
    %v675 = vunpack.c.l.b16 %v182
    %v676 = vunpack.c.h.b16 %v182
    %v677 = vunpack.c.l.b16 %v183
    %v678 = vunpack.c.h.b16 %v183
    %v679 = vunpack.c.l.b16 %v184
    %v680 = vunpack.c.h.b16 %v184
    %v681 = vunpack.c.l.b16 %v185
    %v682 = vunpack.c.h.b16 %v185
    %v683 = vunpack.c.l.b16 %v186
    %v684 = vunpack.c.h.b16 %v186
    %v685 = vunpack.c.l.b16 %v187
    %v686 = vunpack.c.h.b16 %v187
    %v687 = vunpack.c.l.b16 %v188
    %v688 = vunpack.c.h.b16 %v188
    %v689 = vunpack.c.l.b16 %v189
    %v690 = vunpack.c.h.b16 %v189
    %v691 = vunpack.c.l.b16 %v190
    %v692 = vunpack.c.h.b16 %v190
    %v693 = vunpack.c.l.b16 %v191
    %v694 = vunpack.c.h.b16 %v191
    %v695 = vunpack.c.l.b16 %v192
    %v696 = vunpack.c.h.b16 %v192
    %v697 = vunpack.c.l.b16 %v193
    %v698 = vunpack.c.h.b16 %v193
    %v699 = vunpack.c.l.b16 %v194
    %v700 = vunpack.c.h.b16 %v194
    %v701 = vunpack.c.l.b16 %v195
    %v702 = vunpack.c.h.b16 %v195
    %v703 = vunpack.c.l.b16 %v196
    %v704 = vunpack.c.h.b16 %v196
    %v705 = vunpack.c.l.b16 %v197
    %v706 = vunpack.c.h.b16 %v197
    %v707 = vunpack.c.l.b16 %v198
    %v708 = vunpack.c.h.b16 %v198
    %v709 = vunpack.c.l.b16 %v199
    %v710 = vunpack.c.h.b16 %v199
    %v711 = vunpack.c.l.b16 %v200
    %v712 = vunpack.c.h.b16 %v200
    %v713 = vunpack.c.l.b16 %v201
    %v714 = vunpack.c.h.b16 %v201
    %v715 = vunpack.c.l.b16 %v202
    %v716 = vunpack.c.h.b16 %v202
    %v717 = vunpack.c.l.b16 %v203
    %v718 = vunpack.c.h.b16 %v203
    %v719 = vunpack.c.l.b16 %v204
    %v720 = vunpack.c.h.b16 %v204
    %v721 = vunpack.c.l.b16 %v205
    %v722 = vunpack.c.h.b16 %v205
    %v723 = vunpack.c.l.b16 %v206
    %v724 = vunpack.c.h.b16 %v206
    %v725 = vunpack.c.l.b16 %v207
    %v726 = vunpack.c.h.b16 %v207
    %v727 = vunpack.c.l.b16 %v208
    %v728 = vunpack.c.h.b16 %v208
    %v729 = vunpack.c.l.b16 %v209
    %v730 = vunpack.c.h.b16 %v209
    %v731 = vunpack.c.l.b16 %v210
    %v732 = vunpack.c.h.b16 %v210
    %v733 = vunpack.c.l.b16 %v211
    %v734 = vunpack.c.h.b16 %v211
    %v735 = vunpack.c.l.b16 %v212
    %v736 = vunpack.c.h.b16 %v212
    %v737 = vunpack.c.l.b16 %v213
    %v738 = vunpack.c.h.b16 %v213
    %v739 = vunpack.c.l.b16 %v214
    %v740 = vunpack.c.h.b16 %v214
    %v741 = vunpack.c.l.b16 %v215
    %v742 = vunpack.c.h.b16 %v215
    %v743 = vunpack.c.l.b16 %v216
    %v744 = vunpack.c.h.b16 %v216
    %v745 = vunpack.c.l.b16 %v217
    %v746 = vunpack.c.h.b16 %v217
    %v747 = vunpack.c.l.b16 %v218
    %v748 = vunpack.c.h.b16 %v218
    %v749 = vunpack.c.l.b16 %v219
    %v750 = vunpack.c.h.b16 %v219
    %v751 = vunpack.c.l.b16 %v220
    %v752 = vunpack.c.h.b16 %v220
    %v753 = vunpack.c.l.b16 %v221
    %v754 = vunpack.c.h.b16 %v221
    %v755 = vunpack.c.l.b16 %v222
    %v756 = vunpack.c.h.b16 %v222
    %v757 = vunpack.c.l.b16 %v223
    %v758 = vunpack.c.h.b16 %v223
    %v759 = vunpack.c.l.b16 %v224
    %v760 = vunpack.c.h.b16 %v224
    %v761 = vunpack.c.l.b16 %v225
    %v762 = vunpack.c.h.b16 %v225
    %v763 = vunpack.c.l.b16 %v226
    %v764 = vunpack.c.h.b16 %v226
    %v765 = vunpack.c.l.b16 %v227
    %v766 = vunpack.c.h.b16 %v227
    %v767 = vunpack.c.l.b16 %v228
    %v768 = vunpack.c.h.b16 %v228
    %v769 = vunpack.c.l.b16 %v229
    %v770 = vunpack.c.h.b16 %v229
    %v771 = vunpack.c.l.b16 %v230
    %v772 = vunpack.c.h.b16 %v230
    %v773 = vunpack.c.l.b16 %v231
    %v774 = vunpack.c.h.b16 %v231
    %v775 = vunpack.c.l.b16 %v232
    %v776 = vunpack.c.h.b16 %v232
    %v777 = vunpack.c.l.b16 %v233
    %v778 = vunpack.c.h.b16 %v233
    %v779 = vunpack.c.l.b16 %v234
    %v780 = vunpack.c.h.b16 %v234
    %v781 = vunpack.c.l.b16 %v235
    %v782 = vunpack.c.h.b16 %v235
    %v783 = vunpack.c.l.b16 %v236
    %v784 = vunpack.c.h.b16 %v236
    %v785 = vunpack.c.l.b16 %v237
    %v786 = vunpack.c.h.b16 %v237
    %v787 = vunpack.c.l.b16 %v238
    %v788 = vunpack.c.h.b16 %v238
    %v789 = vunpack.c.l.b16 %v239
    %v790 = vunpack.c.h.b16 %v239
    %v791 = vunpack.c.l.b16 %v240
    %v792 = vunpack.c.h.b16 %v240
    %v793 = vunpack.c.l.b16 %v241
    %v794 = vunpack.c.h.b16 %v241
    %v795 = vunpack.c.l.b16 %v242
    %v796 = vunpack.c.h.b16 %v242
    %v797 = vunpack.c.l.b16 %v243
    %v798 = vunpack.c.h.b16 %v243
    %v799 = vunpack.c.l.b16 %v244
    %v800 = vunpack.c.h.b16 %v244
    %v801 = vunpack.c.l.b16 %v245
    %v802 = vunpack.c.h.b16 %v245
    %v803 = vunpack.c.l.b16 %v246
    %v804 = vunpack.c.h.b16 %v246
    %v805 = vunpack.c.l.b16 %v247
    %v806 = vunpack.c.h.b16 %v247
    %v807 = vunpack.c.l.b16 %v248
    %v808 = vunpack.c.h.b16 %v248
    %v809 = vunpack.c.l.b16 %v249
    %v810 = vunpack.c.h.b16 %v249
    %v811 = vunpack.c.l.b16 %v250
    %v812 = vunpack.c.h.b16 %v250
    %v813 = vunpack.c.l.b16 %v251
    %v814 = vunpack.c.h.b16 %v251
    %v815 = vunpack.c.l.b16 %v252
    %v816 = vunpack.c.h.b16 %v252
    %v817 = vunpack.c.l.b16 %v253
    %v818 = vunpack.c.h.b16 %v253
    %v819 = vunpack.c.l.b16 %v254
    %v820 = vunpack.c.h.b16 %v254
    %v821 = vunpack.c.l.b16 %v255
    %v822 = vunpack.c.h.b16 %v255
    %v823 = vunpack.c.l.b16 %v256
    %v824 = vunpack.c.h.b16 %v256
    %v825 = vunpack.c.l.b16 %v257
    %v826 = vunpack.c.h.b16 %v257
    %v827 = vunpack.c.l.b16 %v258
    %v828 = vunpack.c.h.b16 %v258
    %v829 = vunpack.c.l.b16 %v259
    %v830 = vunpack.c.h.b16 %v259
    %v831 = vunpack.c.l.b16 %v260
    %v832 = vunpack.c.h.b16 %v260
    %v833 = vunpack.c.l.b16 %v261
    %v834 = vunpack.c.h.b16 %v261
    %v835 = vunpack.c.l.b16 %v262
    %v836 = vunpack.c.h.b16 %v262
    %v837 = vunpack.c.l.b16 %v263
    %v838 = vunpack.c.h.b16 %v263
    %v839 = vunpack.c.l.b16 %v264
    %v840 = vunpack.c.h.b16 %v264
    %v841 = vunpack.c.l.b16 %v265
    %v842 = vunpack.c.h.b16 %v265
    %v843 = vunpack.c.l.b16 %v266
    %v844 = vunpack.c.h.b16 %v266
    %v845 = vunpack.c.l.b16 %v267
    %v846 = vunpack.c.h.b16 %v267
    %v847 = vunpack.c.l.b16 %v268
    %v848 = vunpack.c.h.b16 %v268
    %v849 = vunpack.c.l.b16 %v269
    %v850 = vunpack.c.h.b16 %v269
    %v851 = vunpack.c.l.b16 %v270
    %v852 = vunpack.c.h.b16 %v270
    %v853 = vunpack.c.l.b16 %v271
    %v854 = vunpack.c.h.b16 %v271
    %v855 = vunpack.c.l.b16 %v272
    %v856 = vunpack.c.h.b16 %v272
    %v857 = vunpack.c.l.b16 %v273
    %v858 = vunpack.c.h.b16 %v273
    %v859 = vunpack.c.l.b16 %v274
    %v860 = vunpack.c.h.b16 %v274
    %v861 = vunpack.c.l.b16 %v275
    %v862 = vunpack.c.h.b16 %v275
    %v863 = vunpack.c.l.b16 %v276
    %v864 = vunpack.c.h.b16 %v276
    %v865 = vunpack.c.l.b16 %v277
    %v866 = vunpack.c.h.b16 %v277
    %v867 = vunpack.c.l.b16 %v278
    %v868 = vunpack.c.h.b16 %v278
    %v869 = vunpack.c.l.b16 %v279
    %v870 = vunpack.c.h.b16 %v279
    %v871 = vunpack.c.l.b16 %v280
    %v872 = vunpack.c.h.b16 %v280
    %v873 = vunpack.c.l.b16 %v281
    %v874 = vunpack.c.h.b16 %v281
    %v875 = vunpack.c.l.b16 %v282
    %v876 = vunpack.c.h.b16 %v282
    %v877 = vunpack.c.l.b16 %v283
    %v878 = vunpack.c.h.b16 %v283
    %v879 = vunpack.c.l.b16 %v284
    %v880 = vunpack.c.h.b16 %v284
    %v881 = vunpack.c.l.b16 %v285
    %v882 = vunpack.c.h.b16 %v285
    %v883 = vunpack.c.l.b16 %v286
    %v884 = vunpack.c.h.b16 %v286
    %v885 = vunpack.c.l.b16 %v287
    %v886 = vunpack.c.h.b16 %v287
    %v887 = vunpack.c.l.b16 %v288
    %v888 = vunpack.c.h.b16 %v288
    %v889 = vunpack.c.l.b16 %v289
    %v890 = vunpack.c.h.b16 %v289
    %v891 = vunpack.c.l.b16 %v290
    %v892 = vunpack.c.h.b16 %v290
    %v893 = vunpack.c.l.b16 %v291
    %v894 = vunpack.c.h.b16 %v291
    %v895 = vunpack.c.l.b16 %v292
    %v896 = vunpack.c.h.b16 %v292
    %v897 = vunpack.c.l.b16 %v293
    %v898 = vunpack.c.h.b16 %v293
    %v899 = vunpack.c.l.b16 %v294
    %v900 = vunpack.c.h.b16 %v294
    %v901 = vunpack.c.l.b16 %v295
    %v902 = vunpack.c.h.b16 %v295
    %v903 = vunpack.c.l.b16 %v296
    %v904 = vunpack.c.h.b16 %v296
    %v905 = vunpack.c.l.b16 %v297
    %v906 = vunpack.c.h.b16 %v297
    %v907 = vunpack.c.l.b16 %v298
    %v908 = vunpack.c.h.b16 %v298
    %v909 = vpack.c.b16 %v521, %v517
    %v910 = vpack.c.b16 %v522, %v518
    %v911 = vpack.c.b16 %v523, %v519
    %v912 = vpack.c.b16 %v524, %v520
    %v913 = vpack.c.b16 %v529, %v525
    %v914 = vpack.c.b16 %v530, %v526
    %v915 = vpack.c.b16 %v531, %v527
    %v916 = vpack.c.b16 %v532, %v528
    %v917 = vpack.c.b16 %v537, %v533
    %v918 = vpack.c.b16 %v538, %v534
    %v919 = vpack.c.b16 %v539, %v535
    %v920 = vpack.c.b16 %v540, %v536
    %v921 = vpack.c.b16 %v545, %v541
    %v922 = vpack.c.b16 %v546, %v542
    %v923 = vpack.c.b16 %v547, %v543
    %v924 = vpack.c.b16 %v548, %v544
    %v925 = vpack.c.b16 %v553, %v549
    %v926 = vpack.c.b16 %v554, %v550
    %v927 = vpack.c.b16 %v555, %v551
    %v928 = vpack.c.b16 %v556, %v552
    %v929 = vpack.c.b16 %v561, %v557
    %v930 = vpack.c.b16 %v562, %v558
    %v931 = vpack.c.b16 %v563, %v559
    %v932 = vpack.c.b16 %v564, %v560
    %v933 = vpack.c.b16 %v569, %v565
    %v934 = vpack.c.b16 %v570, %v566
    %v935 = vpack.c.b16 %v571, %v567
    %v936 = vpack.c.b16 %v572, %v568
    %v937 = vpack.c.b16 %v577, %v573
    %v938 = vpack.c.b16 %v578, %v574
    %v939 = vpack.c.b16 %v579, %v575
    %v940 = vpack.c.b16 %v580, %v576
    %v941 = vpack.c.b16 %v585, %v581
    %v942 = vpack.c.b16 %v586, %v582
    %v943 = vpack.c.b16 %v587, %v583
    %v944 = vpack.c.b16 %v588, %v584
    %v945 = vpack.c.b16 %v593, %v589
    %v946 = vpack.c.b16 %v594, %v590
    %v947 = vpack.c.b16 %v595, %v591
    %v948 = vpack.c.b16 %v596, %v592
    %v949 = vpack.c.b16 %v601, %v597
    %v950 = vpack.c.b16 %v602, %v598
    %v951 = vpack.c.b16 %v603, %v599
    %v952 = vpack.c.b16 %v604, %v600
    %v953 = vpack.c.b16 %v609, %v605
    %v954 = vpack.c.b16 %v610, %v606
    %v955 = vpack.c.b16 %v611, %v607
    %v956 = vpack.c.b16 %v612, %v608
    %v957 = vpack.c.b16 %v617, %v613
    %v958 = vpack.c.b16 %v618, %v614
    %v959 = vpack.c.b16 %v619, %v615
    %v960 = vpack.c.b16 %v620, %v616
    %v961 = vpack.c.b16 %v625, %v621
    %v962 = vpack.c.b16 %v626, %v622
    %v963 = vpack.c.b16 %v627, %v623
    %v964 = vpack.c.b16 %v628, %v624
    %v965 = vpack.c.b16 %v633, %v629
    %v966 = vpack.c.b16 %v634, %v630
    %v967 = vpack.c.b16 %v635, %v631
    %v968 = vpack.c.b16 %v636, %v632
    %v969 = vpack.c.b16 %v641, %v637
    %v970 = vpack.c.b16 %v642, %v638
    %v971 = vpack.c.b16 %v643, %v639
    %v972 = vpack.c.b16 %v644, %v640
    %v973 = vpack.c.b16 %v649, %v645
    %v974 = vpack.c.b16 %v650, %v646
    %v975 = vpack.c.b16 %v651, %v647
    %v976 = vpack.c.b16 %v652, %v648
    %v977 = vpack.c.b16 %v657, %v653
    %v978 = vpack.c.b16 %v658, %v654
    %v979 = vpack.c.b16 %v659, %v655
    %v980 = vpack.c.b16 %v660, %v656
    %v981 = vpack.c.b16 %v665, %v661
    %v982 = vpack.c.b16 %v666, %v662
    %v983 = vpack.c.b16 %v667, %v663
    %v984 = vpack.c.b16 %v668, %v664
    %v985 = vpack.c.b16 %v673, %v669
    %v986 = vpack.c.b16 %v674, %v670
    %v987 = vpack.c.b16 %v675, %v671
    %v988 = vpack.c.b16 %v676, %v672
    %v989 = vpack.c.b16 %v681, %v677
    %v990 = vpack.c.b16 %v682, %v678
    %v991 = vpack.c.b16 %v683, %v679
    %v992 = vpack.c.b16 %v684, %v680
    %v993 = vpack.c.b16 %v689, %v685
    %v994 = vpack.c.b16 %v690, %v686
    %v995 = vpack.c.b16 %v691, %v687
    %v996 = vpack.c.b16 %v692, %v688
    %v997 = vpack.c.b16 %v697, %v693
    %v998 = vpack.c.b16 %v698, %v694
    %v999 = vpack.c.b16 %v699, %v695
    %v1000 = vpack.c.b16 %v700, %v696
    %v1001 = vpack.c.b16 %v705, %v701
    %v1002 = vpack.c.b16 %v706, %v702
    %v1003 = vpack.c.b16 %v707, %v703
    %v1004 = vpack.c.b16 %v708, %v704
    %v1005 = vpack.c.b16 %v713, %v709
    %v1006 = vpack.c.b16 %v714, %v710
    %v1007 = vpack.c.b16 %v715, %v711
    %v1008 = vpack.c.b16 %v716, %v712
    %v1009 = vpack.c.b16 %v721, %v717
    %v1010 = vpack.c.b16 %v722, %v718
    %v1011 = vpack.c.b16 %v723, %v719
    %v1012 = vpack.c.b16 %v724, %v720
    %v1013 = vpack.c.b16 %v729, %v725
    %v1014 = vpack.c.b16 %v730, %v726
    %v1015 = vpack.c.b16 %v731, %v727
    %v1016 = vpack.c.b16 %v732, %v728
    %v1017 = vpack.c.b16 %v737, %v733
    %v1018 = vpack.c.b16 %v738, %v734
    %v1019 = vpack.c.b16 %v739, %v735
    %v1020 = vpack.c.b16 %v740, %v736
    %v1021 = vpack.c.b16 %v745, %v741
    %v1022 = vpack.c.b16 %v746, %v742
    %v1023 = vpack.c.b16 %v747, %v743
    %v1024 = vpack.c.b16 %v748, %v744
    %v1025 = vpack.c.b16 %v753, %v749
    %v1026 = vpack.c.b16 %v754, %v750
    %v1027 = vpack.c.b16 %v755, %v751
    %v1028 = vpack.c.b16 %v756, %v752
    %v1029 = vpack.c.b16 %v761, %v757
    %v1030 = vpack.c.b16 %v762, %v758
    %v1031 = vpack.c.b16 %v763, %v759
    %v1032 = vpack.c.b16 %v764, %v760
    %v1033 = vpack.c.b16 %v769, %v765
    %v1034 = vpack.c.b16 %v770, %v766
    %v1035 = vpack.c.b16 %v771, %v767
    %v1036 = vpack.c.b16 %v772, %v768
    %v1037 = vpack.c.b16 %v777, %v773
    %v1038 = vpack.c.b16 %v778, %v774
    %v1039 = vpack.c.b16 %v779, %v775
    %v1040 = vpack.c.b16 %v780, %v776
    %v1041 = vpack.c.b16 %v785, %v781
    %v1042 = vpack.c.b16 %v786, %v782
    %v1043 = vpack.c.b16 %v787, %v783
    %v1044 = vpack.c.b16 %v788, %v784
    %v1045 = vpack.c.b16 %v793, %v789
    %v1046 = vpack.c.b16 %v794, %v790
    %v1047 = vpack.c.b16 %v795, %v791
    %v1048 = vpack.c.b16 %v796, %v792
    %v1049 = vpack.c.b16 %v801, %v797
    %v1050 = vpack.c.b16 %v802, %v798
    %v1051 = vpack.c.b16 %v803, %v799
    %v1052 = vpack.c.b16 %v804, %v800
    %v1053 = vpack.c.b16 %v809, %v805
    %v1054 = vpack.c.b16 %v810, %v806
    %v1055 = vpack.c.b16 %v811, %v807
    %v1056 = vpack.c.b16 %v812, %v808
    %v1057 = vpack.c.b16 %v817, %v813
    %v1058 = vpack.c.b16 %v818, %v814
    %v1059 = vpack.c.b16 %v819, %v815
    %v1060 = vpack.c.b16 %v820, %v816
    %v1061 = vpack.c.b16 %v825, %v821
    %v1062 = vpack.c.b16 %v826, %v822
    %v1063 = vpack.c.b16 %v827, %v823
    %v1064 = vpack.c.b16 %v828, %v824
    %v1065 = vpack.c.b16 %v833, %v829
    %v1066 = vpack.c.b16 %v834, %v830
    %v1067 = vpack.c.b16 %v835, %v831
    %v1068 = vpack.c.b16 %v836, %v832
    %v1069 = vpack.c.b16 %v841, %v837
    %v1070 = vpack.c.b16 %v842, %v838
    %v1071 = vpack.c.b16 %v843, %v839
    %v1072 = vpack.c.b16 %v844, %v840
    %v1073 = vpack.c.b16 %v849, %v845
    %v1074 = vpack.c.b16 %v850, %v846
    %v1075 = vpack.c.b16 %v851, %v847
    %v1076 = vpack.c.b16 %v852, %v848
    %v1077 = vpack.c.b16 %v857, %v853
    %v1078 = vpack.c.b16 %v858, %v854
    %v1079 = vpack.c.b16 %v859, %v855
    %v1080 = vpack.c.b16 %v860, %v856
    %v1081 = vpack.c.b16 %v865, %v861
    %v1082 = vpack.c.b16 %v866, %v862
    %v1083 = vpack.c.b16 %v867, %v863
    %v1084 = vpack.c.b16 %v868, %v864
    %v1085 = vpack.c.b16 %v873, %v869
    %v1086 = vpack.c.b16 %v874, %v870
    %v1087 = vpack.c.b16 %v875, %v871
    %v1088 = vpack.c.b16 %v876, %v872
    %v1089 = vpack.c.b16 %v881, %v877
    %v1090 = vpack.c.b16 %v882, %v878
    %v1091 = vpack.c.b16 %v883, %v879
    %v1092 = vpack.c.b16 %v884, %v880
    %v1093 = vpack.c.b16 %v889, %v885
    %v1094 = vpack.c.b16 %v890, %v886
    %v1095 = vpack.c.b16 %v891, %v887
    %v1096 = vpack.c.b16 %v892, %v888
    %v1097 = vpack.c.b16 %v897, %v893
    %v1098 = vpack.c.b16 %v898, %v894
    %v1099 = vpack.c.b16 %v899, %v895
    %v1100 = vpack.c.b16 %v900, %v896
    %v1101 = vpack.c.b16 %v905, %v901
    %v1102 = vpack.c.b16 %v906, %v902
    %v1103 = vpack.c.b16 %v907, %v903
    %v1104 = vpack.c.b16 %v908, %v904
    %vm1301 = vcmask 130048
    %v1303 = vsel %vm1301, %v102, 0
    %1305 = vmatprep.subr.bf16.mxu0 %v938
    %1306 = vmatpush1.bf16.msra.mxu0 %v937
    %1307 = vmatprep.subr.bf16.mxu0 %v934
    %1308 = vmatpush1.bf16.msra.mxu0 %v933
    %1309 = vmatprep.subr.bf16.mxu0 %v930
    %1310 = vmatpush1.bf16.msra.mxu0 %v929
    %1311 = vmatprep.subr.bf16.mxu0 %v926
    %1312 = vmatpush1.bf16.msra.mxu0 %v925
    %1313 = vmatprep.subr.bf16.mxu0 %v922
    %1314 = vmatpush1.bf16.msra.mxu0 %v921
    %1315 = vmatprep.subr.bf16.mxu0 %v918
    %1316 = vmatpush1.bf16.msra.mxu0 %v917
    %1317 = vmatprep.subr.bf16.mxu0 %v914
    %1318 = vmatpush1.bf16.msra.mxu0 %v913
    %1319 = vmatprep.subr.bf16.mxu0 %v910
    %1320 = vmatpush1.bf16.msra.mxu0 %v909
    %1321 = vmatprep.subr.bf16.mxu0 %v970
    %1322 = vmatpush2.bf16.msra.mxu0 %v969
    %1323 = vmatprep.subr.bf16.mxu0 %v966
    %1324 = vmatpush2.bf16.msra.mxu0 %v965
    %1325 = vmatprep.subr.bf16.mxu0 %v962
    %1326 = vmatpush2.bf16.msra.mxu0 %v961
    %1327 = vmatprep.subr.bf16.mxu0 %v958
    %1328 = vmatpush2.bf16.msra.mxu0 %v957
    %1329 = vmatprep.subr.bf16.mxu0 %v954
    %1330 = vmatpush2.bf16.msra.mxu0 %v953
    %1331 = vmatprep.subr.bf16.mxu0 %v950
    %1332 = vmatpush2.bf16.msra.mxu0 %v949
    %1333 = vmatprep.subr.bf16.mxu0 %v946
    %1334 = vmatpush2.bf16.msra.mxu0 %v945
    %1335 = vmatprep.subr.bf16.mxu0 %v942
    %1336 = vmatpush2.bf16.msra.mxu0 %v941
    %1337 = vmatprep.mubr.bf16.mxu0 %v97
    %1338 = vmatmul.mubr.bf16.gmra.mxu0 %v96
    %v1339 = vpop.f32.mrf.mxu0
    %v1340 = vadd.f32 %v304, %v1339
    %v1341 = vpop.f32.mrf.mxu0
    %v1342 = vadd.f32 %v308, %v1341
    %v1343 = vpop.f32.mrf.mxu0
    %v1344 = vpop.f32.mrf.mxu0
    %1345 = vdwg.mxu0
    %1346 = vmatprep.subr.bf16.mxu0 %v1002
    %1347 = vmatpush1.bf16.msra.mxu0 %v1001
    %1348 = vmatprep.subr.bf16.mxu0 %v998
    %1349 = vmatpush1.bf16.msra.mxu0 %v997
    %1350 = vmatprep.subr.bf16.mxu0 %v994
    %1351 = vmatpush1.bf16.msra.mxu0 %v993
    %1352 = vmatprep.subr.bf16.mxu0 %v990
    %1353 = vmatpush1.bf16.msra.mxu0 %v989
    %1354 = vmatprep.subr.bf16.mxu0 %v986
    %1355 = vmatpush1.bf16.msra.mxu0 %v985
    %1356 = vmatprep.subr.bf16.mxu0 %v982
    %1357 = vmatpush1.bf16.msra.mxu0 %v981
    %1358 = vmatprep.subr.bf16.mxu0 %v978
    %1359 = vmatpush1.bf16.msra.mxu0 %v977
    %1360 = vmatprep.subr.bf16.mxu0 %v974
    %1361 = vmatpush1.bf16.msra.mxu0 %v973
    %1362 = vmatprep.subr.bf16.mxu0 %v1034
    %1363 = vmatpush2.bf16.msra.mxu0 %v1033
    %1364 = vmatprep.subr.bf16.mxu0 %v1030
    %1365 = vmatpush2.bf16.msra.mxu0 %v1029
    %1366 = vmatprep.subr.bf16.mxu0 %v1026
    %1367 = vmatpush2.bf16.msra.mxu0 %v1025
    %1368 = vmatprep.subr.bf16.mxu0 %v1022
    %1369 = vmatpush2.bf16.msra.mxu0 %v1021
    %1370 = vmatprep.subr.bf16.mxu0 %v1018
    %1371 = vmatpush2.bf16.msra.mxu0 %v1017
    %1372 = vmatprep.subr.bf16.mxu0 %v1014
    %1373 = vmatpush2.bf16.msra.mxu0 %v1013
    %1374 = vmatprep.subr.bf16.mxu0 %v1010
    %1375 = vmatpush2.bf16.msra.mxu0 %v1009
    %1376 = vmatprep.subr.bf16.mxu0 %v1006
    %1377 = vmatpush2.bf16.msra.mxu0 %v1005
    %1378 = vmatprep.mubr.bf16.mxu0 %v99
    %1379 = vmatmul.mubr.bf16.gmra.mxu0 %v98
    %v1380 = vpop.f32.mrf.mxu0
    %v1381 = vadd.f32 %v1340, %v1380
    %v1382 = vpop.f32.mrf.mxu0
    %v1383 = vadd.f32 %v1342, %v1382
    %v1384 = vpop.f32.mrf.mxu0
    %v1385 = vpop.f32.mrf.mxu0
    %1386 = vdwg.mxu0
    %1387 = vmatprep.subr.bf16.mxu0 %v1066
    %1388 = vmatpush1.bf16.msra.mxu0 %v1065
    %1389 = vmatprep.subr.bf16.mxu0 %v1062
    %1390 = vmatpush1.bf16.msra.mxu0 %v1061
    %1391 = vmatprep.subr.bf16.mxu0 %v1058
    %1392 = vmatpush1.bf16.msra.mxu0 %v1057
    %1393 = vmatprep.subr.bf16.mxu0 %v1054
    %1394 = vmatpush1.bf16.msra.mxu0 %v1053
    %1395 = vmatprep.subr.bf16.mxu0 %v1050
    %1396 = vmatpush1.bf16.msra.mxu0 %v1049
    %1397 = vmatprep.subr.bf16.mxu0 %v1046
    %1398 = vmatpush1.bf16.msra.mxu0 %v1045
    %1399 = vmatprep.subr.bf16.mxu0 %v1042
    %1400 = vmatpush1.bf16.msra.mxu0 %v1041
    %1401 = vmatprep.subr.bf16.mxu0 %v1038
    %1402 = vmatpush1.bf16.msra.mxu0 %v1037
    %1403 = vmatprep.subr.bf16.mxu0 %v1098
    %1404 = vmatpush2.bf16.msra.mxu0 %v1097
    %1405 = vmatprep.subr.bf16.mxu0 %v1094
    %1406 = vmatpush2.bf16.msra.mxu0 %v1093
    %1407 = vmatprep.subr.bf16.mxu0 %v1090
    %1408 = vmatpush2.bf16.msra.mxu0 %v1089
    %1409 = vmatprep.subr.bf16.mxu0 %v1086
    %1410 = vmatpush2.bf16.msra.mxu0 %v1085
    %1411 = vmatprep.subr.bf16.mxu0 %v1082
    %1412 = vmatpush2.bf16.msra.mxu0 %v1081
    %1413 = vmatprep.subr.bf16.mxu0 %v1078
    %1414 = vmatpush2.bf16.msra.mxu0 %v1077
    %1415 = vmatprep.subr.bf16.mxu0 %v1074
    %1416 = vmatpush2.bf16.msra.mxu0 %v1073
    %1417 = vmatprep.subr.bf16.mxu0 %v1070
    %1418 = vmatpush2.bf16.msra.mxu0 %v1069
    %1419 = vmatprep.mubr.bf16.mxu0 %v101
    %1420 = vmatmul.mubr.bf16.gmra.mxu0 %v100
    %v1421 = vpop.f32.mrf.mxu0
    %v1422 = vadd.f32 %v1381, %v1421
    %v1423 = vpop.f32.mrf.mxu0
    %v1424 = vadd.f32 %v1383, %v1423
    %v1425 = vpop.f32.mrf.mxu0
    %v1426 = vpop.f32.mrf.mxu0
    %1427 = vdwg.mxu0
    %1428 = vmatprep.subr.bf16.mxu0 0
    %1429 = vmatpush1.bf16.msra.mxu0 0
    %1430 = vmatprep.subr.bf16.mxu0 0
    %1431 = vmatpush1.bf16.msra.mxu0 0
    %1432 = vmatprep.subr.bf16.mxu0 0
    %1433 = vmatpush1.bf16.msra.mxu0 0
    %1434 = vmatprep.subr.bf16.mxu0 0
    %1435 = vmatpush1.bf16.msra.mxu0 0
    %1436 = vmatprep.subr.bf16.mxu0 0
    %1437 = vmatpush1.bf16.msra.mxu0 0
    %1438 = vmatprep.subr.bf16.mxu0 0
    %1439 = vmatpush1.bf16.msra.mxu0 0
    %1440 = vmatprep.subr.bf16.mxu0 0
    %1441 = vmatpush1.bf16.msra.mxu0 0
    %1442 = vmatprep.subr.bf16.mxu0 %v1102
    %1443 = vmatpush1.bf16.msra.mxu0 %v1101
    %1444 = vmatprep.subr.bf16.mxu0 0
    %1445 = vmatpush2.bf16.msra.mxu0 0
    %1446 = vmatprep.subr.bf16.mxu0 0
    %1447 = vmatpush2.bf16.msra.mxu0 0
    %1448 = vmatprep.subr.bf16.mxu0 0
    %1449 = vmatpush2.bf16.msra.mxu0 0
    %1450 = vmatprep.subr.bf16.mxu0 0
    %1451 = vmatpush2.bf16.msra.mxu0 0
    %1452 = vmatprep.subr.bf16.mxu0 0
    %1453 = vmatpush2.bf16.msra.mxu0 0
    %1454 = vmatprep.subr.bf16.mxu0 0
    %1455 = vmatpush2.bf16.msra.mxu0 0
    %1456 = vmatprep.subr.bf16.mxu0 0
    %1457 = vmatpush2.bf16.msra.mxu0 0
    %1458 = vmatprep.subr.bf16.mxu0 0
    %1459 = vmatpush2.bf16.msra.mxu0 0
    %1460 = vmatprep.mubr.bf16.mxu0 0
    %1461 = vmatmul.mubr.bf16.gmra.mxu0 %v1303
    %v1462 = vpop.f32.mrf.mxu0
    %v1463 = vadd.f32 %v1422, %v1462
    %v1464 = vpop.f32.mrf.mxu0
    %v1465 = vadd.f32 %v1424, %v1464
    %v1466 = vpop.f32.mrf.mxu0
    %v1467 = vpop.f32.mrf.mxu0
    %1468 = vdwg.mxu0
    %1469 = vmatprep.subr.bf16.mxu0 %v940
    %1470 = vmatpush1.bf16.msra.mxu0 %v939
    %1471 = vmatprep.subr.bf16.mxu0 %v936
    %1472 = vmatpush1.bf16.msra.mxu0 %v935
    %1473 = vmatprep.subr.bf16.mxu0 %v932
    %1474 = vmatpush1.bf16.msra.mxu0 %v931
    %1475 = vmatprep.subr.bf16.mxu0 %v928
    %1476 = vmatpush1.bf16.msra.mxu0 %v927
    %1477 = vmatprep.subr.bf16.mxu0 %v924
    %1478 = vmatpush1.bf16.msra.mxu0 %v923
    %1479 = vmatprep.subr.bf16.mxu0 %v920
    %1480 = vmatpush1.bf16.msra.mxu0 %v919
    %1481 = vmatprep.subr.bf16.mxu0 %v916
    %1482 = vmatpush1.bf16.msra.mxu0 %v915
    %1483 = vmatprep.subr.bf16.mxu0 %v912
    %1484 = vmatpush1.bf16.msra.mxu0 %v911
    %1485 = vmatprep.subr.bf16.mxu0 %v972
    %1486 = vmatpush2.bf16.msra.mxu0 %v971
    %1487 = vmatprep.subr.bf16.mxu0 %v968
    %1488 = vmatpush2.bf16.msra.mxu0 %v967
    %1489 = vmatprep.subr.bf16.mxu0 %v964
    %1490 = vmatpush2.bf16.msra.mxu0 %v963
    %1491 = vmatprep.subr.bf16.mxu0 %v960
    %1492 = vmatpush2.bf16.msra.mxu0 %v959
    %1493 = vmatprep.subr.bf16.mxu0 %v956
    %1494 = vmatpush2.bf16.msra.mxu0 %v955
    %1495 = vmatprep.subr.bf16.mxu0 %v952
    %1496 = vmatpush2.bf16.msra.mxu0 %v951
    %1497 = vmatprep.subr.bf16.mxu0 %v948
    %1498 = vmatpush2.bf16.msra.mxu0 %v947
    %1499 = vmatprep.subr.bf16.mxu0 %v944
    %1500 = vmatpush2.bf16.msra.mxu0 %v943
    %1501 = vmatprep.mubr.bf16.mxu0 %v97
    %1502 = vmatmul.mubr.bf16.gmra.mxu0 %v96
    %v1503 = vpop.f32.mrf.mxu0
    %v1504 = vadd.f32 %v312, %v1503
    %v1505 = vpop.f32.mrf.mxu0
    %v1506 = vadd.f32 %v316, %v1505
    %v1507 = vpop.f32.mrf.mxu0
    %v1508 = vpop.f32.mrf.mxu0
    %1509 = vdwg.mxu0
    %1510 = vmatprep.subr.bf16.mxu0 %v1004
    %1511 = vmatpush1.bf16.msra.mxu0 %v1003
    %1512 = vmatprep.subr.bf16.mxu0 %v1000
    %1513 = vmatpush1.bf16.msra.mxu0 %v999
    %1514 = vmatprep.subr.bf16.mxu0 %v996
    %1515 = vmatpush1.bf16.msra.mxu0 %v995
    %1516 = vmatprep.subr.bf16.mxu0 %v992
    %1517 = vmatpush1.bf16.msra.mxu0 %v991
    %1518 = vmatprep.subr.bf16.mxu0 %v988
    %1519 = vmatpush1.bf16.msra.mxu0 %v987
    %1520 = vmatprep.subr.bf16.mxu0 %v984
    %1521 = vmatpush1.bf16.msra.mxu0 %v983
    %1522 = vmatprep.subr.bf16.mxu0 %v980
    %1523 = vmatpush1.bf16.msra.mxu0 %v979
    %1524 = vmatprep.subr.bf16.mxu0 %v976
    %1525 = vmatpush1.bf16.msra.mxu0 %v975
    %1526 = vmatprep.subr.bf16.mxu0 %v1036
    %1527 = vmatpush2.bf16.msra.mxu0 %v1035
    %1528 = vmatprep.subr.bf16.mxu0 %v1032
    %1529 = vmatpush2.bf16.msra.mxu0 %v1031
    %1530 = vmatprep.subr.bf16.mxu0 %v1028
    %1531 = vmatpush2.bf16.msra.mxu0 %v1027
    %1532 = vmatprep.subr.bf16.mxu0 %v1024
    %1533 = vmatpush2.bf16.msra.mxu0 %v1023
    %1534 = vmatprep.subr.bf16.mxu0 %v1020
    %1535 = vmatpush2.bf16.msra.mxu0 %v1019
    %1536 = vmatprep.subr.bf16.mxu0 %v1016
    %1537 = vmatpush2.bf16.msra.mxu0 %v1015
    %1538 = vmatprep.subr.bf16.mxu0 %v1012
    %1539 = vmatpush2.bf16.msra.mxu0 %v1011
    %1540 = vmatprep.subr.bf16.mxu0 %v1008
    %1541 = vmatpush2.bf16.msra.mxu0 %v1007
    %1542 = vmatprep.mubr.bf16.mxu0 %v99
    %1543 = vmatmul.mubr.bf16.gmra.mxu0 %v98
    %v1544 = vpop.f32.mrf.mxu0
    %v1545 = vadd.f32 %v1504, %v1544
    %v1546 = vpop.f32.mrf.mxu0
    %v1547 = vadd.f32 %v1506, %v1546
    %v1548 = vpop.f32.mrf.mxu0
    %v1549 = vpop.f32.mrf.mxu0
    %1550 = vdwg.mxu0
    %1551 = vmatprep.subr.bf16.mxu0 %v1068
    %1552 = vmatpush1.bf16.msra.mxu0 %v1067
    %1553 = vmatprep.subr.bf16.mxu0 %v1064
    %1554 = vmatpush1.bf16.msra.mxu0 %v1063
    %1555 = vmatprep.subr.bf16.mxu0 %v1060
    %1556 = vmatpush1.bf16.msra.mxu0 %v1059
    %1557 = vmatprep.subr.bf16.mxu0 %v1056
    %1558 = vmatpush1.bf16.msra.mxu0 %v1055
    %1559 = vmatprep.subr.bf16.mxu0 %v1052
    %1560 = vmatpush1.bf16.msra.mxu0 %v1051
    %1561 = vmatprep.subr.bf16.mxu0 %v1048
    %1562 = vmatpush1.bf16.msra.mxu0 %v1047
    %1563 = vmatprep.subr.bf16.mxu0 %v1044
    %1564 = vmatpush1.bf16.msra.mxu0 %v1043
    %1565 = vmatprep.subr.bf16.mxu0 %v1040
    %1566 = vmatpush1.bf16.msra.mxu0 %v1039
    %1567 = vmatprep.subr.bf16.mxu0 %v1100
    %1568 = vmatpush2.bf16.msra.mxu0 %v1099
    %1569 = vmatprep.subr.bf16.mxu0 %v1096
    %1570 = vmatpush2.bf16.msra.mxu0 %v1095
    %1571 = vmatprep.subr.bf16.mxu0 %v1092
    %1572 = vmatpush2.bf16.msra.mxu0 %v1091
    %1573 = vmatprep.subr.bf16.mxu0 %v1088
    %1574 = vmatpush2.bf16.msra.mxu0 %v1087
    %1575 = vmatprep.subr.bf16.mxu0 %v1084
    %1576 = vmatpush2.bf16.msra.mxu0 %v1083
    %1577 = vmatprep.subr.bf16.mxu0 %v1080
    %1578 = vmatpush2.bf16.msra.mxu0 %v1079
    %1579 = vmatprep.subr.bf16.mxu0 %v1076
    %1580 = vmatpush2.bf16.msra.mxu0 %v1075
    %1581 = vmatprep.subr.bf16.mxu0 %v1072
    %1582 = vmatpush2.bf16.msra.mxu0 %v1071
    %1583 = vmatprep.mubr.bf16.mxu0 %v101
    %1584 = vmatmul.mubr.bf16.gmra.mxu0 %v100
    %v1585 = vpop.f32.mrf.mxu0
    %v1586 = vadd.f32 %v1545, %v1585
    %v1587 = vpop.f32.mrf.mxu0
    %v1588 = vadd.f32 %v1547, %v1587
    %v1589 = vpop.f32.mrf.mxu0
    %v1590 = vpop.f32.mrf.mxu0
    %1591 = vdwg.mxu0
    %1592 = vmatprep.subr.bf16.mxu0 0
    %1593 = vmatpush1.bf16.msra.mxu0 0
    %1594 = vmatprep.subr.bf16.mxu0 0
    %1595 = vmatpush1.bf16.msra.mxu0 0
    %1596 = vmatprep.subr.bf16.mxu0 0
    %1597 = vmatpush1.bf16.msra.mxu0 0
    %1598 = vmatprep.subr.bf16.mxu0 0
    %1599 = vmatpush1.bf16.msra.mxu0 0
    %1600 = vmatprep.subr.bf16.mxu0 0
    %1601 = vmatpush1.bf16.msra.mxu0 0
    %1602 = vmatprep.subr.bf16.mxu0 0
    %1603 = vmatpush1.bf16.msra.mxu0 0
    %1604 = vmatprep.subr.bf16.mxu0 0
    %1605 = vmatpush1.bf16.msra.mxu0 0
    %1606 = vmatprep.subr.bf16.mxu0 %v1104
    %1607 = vmatpush1.bf16.msra.mxu0 %v1103
    %1608 = vmatprep.subr.bf16.mxu0 0
    %1609 = vmatpush2.bf16.msra.mxu0 0
    %1610 = vmatprep.subr.bf16.mxu0 0
    %1611 = vmatpush2.bf16.msra.mxu0 0
    %1612 = vmatprep.subr.bf16.mxu0 0
    %1613 = vmatpush2.bf16.msra.mxu0 0
    %1614 = vmatprep.subr.bf16.mxu0 0
    %1615 = vmatpush2.bf16.msra.mxu0 0
    %1616 = vmatprep.subr.bf16.mxu0 0
    %1617 = vmatpush2.bf16.msra.mxu0 0
    %1618 = vmatprep.subr.bf16.mxu0 0
    %1619 = vmatpush2.bf16.msra.mxu0 0
    %1620 = vmatprep.subr.bf16.mxu0 0
    %1621 = vmatpush2.bf16.msra.mxu0 0
    %1622 = vmatprep.subr.bf16.mxu0 0
    %1623 = vmatpush2.bf16.msra.mxu0 0
    %1624 = vmatprep.mubr.bf16.mxu0 0
    %1625 = vmatmul.mubr.bf16.gmra.mxu0 %v1303
    %v1626 = vpop.f32.mrf.mxu0
    %v1627 = vadd.f32 %v1586, %v1626
    %v1628 = vpop.f32.mrf.mxu0
    %v1629 = vadd.f32 %v1588, %v1628
    %v1630 = vpop.f32.mrf.mxu0
    %v1631 = vpop.f32.mrf.mxu0
    %1632 = vdwg.mxu0
    %vm1633 = vcmp.gt.f32.partialorder %v1463, 0.0
    %vm1634 = vcmp.gt.f32.partialorder %v1465, 0.0
    %vm1635 = vcmp.gt.f32.partialorder %v1627, 0.0
    %vm1636 = vcmp.gt.f32.partialorder %v1629, 0.0
    %v1637 = vmul.f32 %v1463, 0.2
    %v1638 = vmul.f32 %v1465, 0.2
    %v1639 = vmul.f32 %v1627, 0.2
    %v1640 = vmul.f32 %v1629, 0.2
    %v1641 = vsel %vm1633, %v1463, %v1637
    %v1642 = vsel %vm1634, %v1465, %v1638
    %v1643 = vsel %vm1635, %v1627, %v1639
    %v1644 = vsel %vm1636, %v1629, %v1640
    %v1645 = vpack.c.bf16 %v1641, %v1641
    %v1646 = vpack.c.bf16 %v1642, %v1642
    %v1647 = vpack.c.bf16 %v1643, %v1643
    %v1648 = vpack.c.bf16 %v1644, %v1644
    %v1649 = vld [vmem:[#allocation8] sm:$0xff]
    %v1650 = vld [vmem:[#allocation8 + $0x8] sm:$0xff]
    %v1651 = vld [vmem:[#allocation8 + $0x10] sm:$0xff]
    %v1652 = vld [vmem:[#allocation8 + $0x18] sm:$0xff]
    %v1653 = vld [vmem:[#allocation8 + $0x20] sm:$0xff]
    %v1654 = vld [vmem:[#allocation8 + $0x28] sm:$0xff]
    %v1655 = vld [vmem:[#allocation8 + $0x30] sm:$0xff]
    %v1656 = vld [vmem:[#allocation8 + $0x38] sm:$0xff]
    %v1657 = vld [vmem:[#allocation8 + $0x40] sm:$0xff]
    %v1658 = vld [vmem:[#allocation8 + $0x48] sm:$0xff]
    %v1659 = vld [vmem:[#allocation8 + $0x50] sm:$0xff]
    %v1660 = vld [vmem:[#allocation8 + $0x58] sm:$0xff]
    %v1661 = vld [vmem:[#allocation8 + $0x60] sm:$0xff]
    %v1662 = vld [vmem:[#allocation8 + $0x68] sm:$0xff]
    %v1663 = vld [vmem:[#allocation8 + $0x70] sm:$0xff]
    %v1664 = vld [vmem:[#allocation8 + $0x78] sm:$0xff]
    %v1665 = vld [vmem:[#allocation8 + $0x80] sm:$0xff]
    %v1666 = vld [vmem:[#allocation8 + $0x88] sm:$0xff]
    %v1667 = vld [vmem:[#allocation8 + $0x90] sm:$0xff]
    %v1668 = vld [vmem:[#allocation8 + $0x98] sm:$0xff]
    %v1669 = vld [vmem:[#allocation8 + $0xa0] sm:$0xff]
    %v1670 = vld [vmem:[#allocation8 + $0xa8] sm:$0xff]
    %v1671 = vld [vmem:[#allocation8 + $0xb0] sm:$0xff]
    %v1672 = vld [vmem:[#allocation8 + $0xb8] sm:$0xff]
    %v1673 = vld [vmem:[#allocation8 + $0xc0] sm:$0xff]
    %v1674 = vld [vmem:[#allocation8 + $0xc8] sm:$0xff]
    %v1675 = vld [vmem:[#allocation8 + $0xd0] sm:$0xff]
    %v1676 = vld [vmem:[#allocation8 + $0xd8] sm:$0xff]
    %v1677 = vld [vmem:[#allocation8 + $0xe0] sm:$0xff]
    %v1678 = vld [vmem:[#allocation8 + $0xe8] sm:$0xff]
    %v1679 = vld [vmem:[#allocation8 + $0xf0] sm:$0xff]
    %v1680 = vld [vmem:[#allocation8 + $0xf8] sm:$0xff]
    %v1681 = vld [vmem:[#allocation8 + $0x100] sm:$0xff]
    %v1682 = vld [vmem:[#allocation8 + $0x108] sm:$0xff]
    %v1683 = vld [vmem:[#allocation8 + $0x110] sm:$0xff]
    %v1684 = vld [vmem:[#allocation8 + $0x118] sm:$0xff]
    %v1685 = vld [vmem:[#allocation8 + $0x120] sm:$0xff]
    %v1686 = vld [vmem:[#allocation8 + $0x128] sm:$0xff]
    %v1687 = vld [vmem:[#allocation8 + $0x130] sm:$0xff]
    %v1688 = vld [vmem:[#allocation8 + $0x138] sm:$0xff]
    %v1689 = vld [vmem:[#allocation8 + $0x140] sm:$0xff]
    %v1690 = vld [vmem:[#allocation8 + $0x148] sm:$0xff]
    %v1691 = vld [vmem:[#allocation8 + $0x150] sm:$0xff]
    %v1692 = vld [vmem:[#allocation8 + $0x158] sm:$0xff]
    %v1693 = vld [vmem:[#allocation8 + $0x160] sm:$0xff]
    %v1694 = vld [vmem:[#allocation8 + $0x168] sm:$0xff]
    %v1695 = vld [vmem:[#allocation8 + $0x170] sm:$0xff]
    %v1696 = vld [vmem:[#allocation8 + $0x178] sm:$0xff]
    %v1697 = vld [vmem:[#allocation8 + $0x180] sm:$0xff]
    %v1698 = vld [vmem:[#allocation8 + $0x188] sm:$0xff]
    %v1699 = vld [vmem:[#allocation8 + $0x190] sm:$0xff]
    %v1700 = vld [vmem:[#allocation8 + $0x198] sm:$0xff]
    %v1701 = vld [vmem:[#allocation8 + $0x1a0] sm:$0xff]
    %v1702 = vld [vmem:[#allocation8 + $0x1a8] sm:$0xff]
    %v1703 = vld [vmem:[#allocation8 + $0x1b0] sm:$0xff]
    %v1704 = vld [vmem:[#allocation8 + $0x1b8] sm:$0xff]
    %v1705 = vld [vmem:[#allocation8 + $0x1c0] sm:$0xff]
    %v1706 = vld [vmem:[#allocation8 + $0x1c8] sm:$0xff]
    %v1707 = vld [vmem:[#allocation8 + $0x1d0] sm:$0xff]
    %v1708 = vld [vmem:[#allocation8 + $0x1d8] sm:$0xff]
    %v1709 = vld [vmem:[#allocation8 + $0x1e0] sm:$0xff]
    %v1710 = vld [vmem:[#allocation8 + $0x1e8] sm:$0xff]
    %v1711 = vld [vmem:[#allocation8 + $0x1f0] sm:$0xff]
    %v1712 = vld [vmem:[#allocation8 + $0x1f8] sm:$0xff]
    %v1713 = vld [vmem:[%s4] sm:$0x3]
    %v1715 = vlaneseq
    %v1716 = vshrl.u32 %v1715, 7
    %v1717 = vsub.s32 0, %v1716
    %v1718 = vrot.slane %v1713, %v1717
    %v1719 = vlaneseq
    %v1720 = vshrl.u32 %v1719, 7
    %v1721 = vsub.s32 1, %v1720
    %v1722 = vrot.slane %v1713, %v1721
    %v1789 = vunpack.c.l.b16 %v1649
    %v1790 = vunpack.c.h.b16 %v1649
    %v1791 = vunpack.c.l.b16 %v1650
    %v1792 = vunpack.c.h.b16 %v1650
    %v1793 = vunpack.c.l.b16 %v1651
    %v1794 = vunpack.c.h.b16 %v1651
    %v1795 = vunpack.c.l.b16 %v1652
    %v1796 = vunpack.c.h.b16 %v1652
    %v1797 = vunpack.c.l.b16 %v1653
    %v1798 = vunpack.c.h.b16 %v1653
    %v1799 = vunpack.c.l.b16 %v1654
    %v1800 = vunpack.c.h.b16 %v1654
    %v1801 = vunpack.c.l.b16 %v1655
    %v1802 = vunpack.c.h.b16 %v1655
    %v1803 = vunpack.c.l.b16 %v1656
    %v1804 = vunpack.c.h.b16 %v1656
    %v1805 = vunpack.c.l.b16 %v1657
    %v1806 = vunpack.c.h.b16 %v1657
    %v1807 = vunpack.c.l.b16 %v1658
    %v1808 = vunpack.c.h.b16 %v1658
    %v1809 = vunpack.c.l.b16 %v1659
    %v1810 = vunpack.c.h.b16 %v1659
    %v1811 = vunpack.c.l.b16 %v1660
    %v1812 = vunpack.c.h.b16 %v1660
    %v1813 = vunpack.c.l.b16 %v1661
    %v1814 = vunpack.c.h.b16 %v1661
    %v1815 = vunpack.c.l.b16 %v1662
    %v1816 = vunpack.c.h.b16 %v1662
    %v1817 = vunpack.c.l.b16 %v1663
    %v1818 = vunpack.c.h.b16 %v1663
    %v1819 = vunpack.c.l.b16 %v1664
    %v1820 = vunpack.c.h.b16 %v1664
    %v1821 = vunpack.c.l.b16 %v1665
    %v1822 = vunpack.c.h.b16 %v1665
    %v1823 = vunpack.c.l.b16 %v1666
    %v1824 = vunpack.c.h.b16 %v1666
    %v1825 = vunpack.c.l.b16 %v1667
    %v1826 = vunpack.c.h.b16 %v1667
    %v1827 = vunpack.c.l.b16 %v1668
    %v1828 = vunpack.c.h.b16 %v1668
    %v1829 = vunpack.c.l.b16 %v1669
    %v1830 = vunpack.c.h.b16 %v1669
    %v1831 = vunpack.c.l.b16 %v1670
    %v1832 = vunpack.c.h.b16 %v1670
    %v1833 = vunpack.c.l.b16 %v1671
    %v1834 = vunpack.c.h.b16 %v1671
    %v1835 = vunpack.c.l.b16 %v1672
    %v1836 = vunpack.c.h.b16 %v1672
    %v1837 = vunpack.c.l.b16 %v1673
    %v1838 = vunpack.c.h.b16 %v1673
    %v1839 = vunpack.c.l.b16 %v1674
    %v1840 = vunpack.c.h.b16 %v1674
    %v1841 = vunpack.c.l.b16 %v1675
    %v1842 = vunpack.c.h.b16 %v1675
    %v1843 = vunpack.c.l.b16 %v1676
    %v1844 = vunpack.c.h.b16 %v1676
    %v1845 = vunpack.c.l.b16 %v1677
    %v1846 = vunpack.c.h.b16 %v1677
    %v1847 = vunpack.c.l.b16 %v1678
    %v1848 = vunpack.c.h.b16 %v1678
    %v1849 = vunpack.c.l.b16 %v1679
    %v1850 = vunpack.c.h.b16 %v1679
    %v1851 = vunpack.c.l.b16 %v1680
    %v1852 = vunpack.c.h.b16 %v1680
    %v1853 = vunpack.c.l.b16 %v1681
    %v1854 = vunpack.c.h.b16 %v1681
    %v1855 = vunpack.c.l.b16 %v1682
    %v1856 = vunpack.c.h.b16 %v1682
    %v1857 = vunpack.c.l.b16 %v1683
    %v1858 = vunpack.c.h.b16 %v1683
    %v1859 = vunpack.c.l.b16 %v1684
    %v1860 = vunpack.c.h.b16 %v1684
    %v1861 = vunpack.c.l.b16 %v1685
    %v1862 = vunpack.c.h.b16 %v1685
    %v1863 = vunpack.c.l.b16 %v1686
    %v1864 = vunpack.c.h.b16 %v1686
    %v1865 = vunpack.c.l.b16 %v1687
    %v1866 = vunpack.c.h.b16 %v1687
    %v1867 = vunpack.c.l.b16 %v1688
    %v1868 = vunpack.c.h.b16 %v1688
    %v1869 = vunpack.c.l.b16 %v1689
    %v1870 = vunpack.c.h.b16 %v1689
    %v1871 = vunpack.c.l.b16 %v1690
    %v1872 = vunpack.c.h.b16 %v1690
    %v1873 = vunpack.c.l.b16 %v1691
    %v1874 = vunpack.c.h.b16 %v1691
    %v1875 = vunpack.c.l.b16 %v1692
    %v1876 = vunpack.c.h.b16 %v1692
    %v1877 = vunpack.c.l.b16 %v1693
    %v1878 = vunpack.c.h.b16 %v1693
    %v1879 = vunpack.c.l.b16 %v1694
    %v1880 = vunpack.c.h.b16 %v1694
    %v1881 = vunpack.c.l.b16 %v1695
    %v1882 = vunpack.c.h.b16 %v1695
    %v1883 = vunpack.c.l.b16 %v1696
    %v1884 = vunpack.c.h.b16 %v1696
    %v1885 = vunpack.c.l.b16 %v1697
    %v1886 = vunpack.c.h.b16 %v1697
    %v1887 = vunpack.c.l.b16 %v1698
    %v1888 = vunpack.c.h.b16 %v1698
    %v1889 = vunpack.c.l.b16 %v1699
    %v1890 = vunpack.c.h.b16 %v1699
    %v1891 = vunpack.c.l.b16 %v1700
    %v1892 = vunpack.c.h.b16 %v1700
    %v1893 = vunpack.c.l.b16 %v1701
    %v1894 = vunpack.c.h.b16 %v1701
    %v1895 = vunpack.c.l.b16 %v1702
    %v1896 = vunpack.c.h.b16 %v1702
    %v1897 = vunpack.c.l.b16 %v1703
    %v1898 = vunpack.c.h.b16 %v1703
    %v1899 = vunpack.c.l.b16 %v1704
    %v1900 = vunpack.c.h.b16 %v1704
    %v1901 = vunpack.c.l.b16 %v1705
    %v1902 = vunpack.c.h.b16 %v1705
    %v1903 = vunpack.c.l.b16 %v1706
    %v1904 = vunpack.c.h.b16 %v1706
    %v1905 = vunpack.c.l.b16 %v1707
    %v1906 = vunpack.c.h.b16 %v1707
    %v1907 = vunpack.c.l.b16 %v1708
    %v1908 = vunpack.c.h.b16 %v1708
    %v1909 = vunpack.c.l.b16 %v1709
    %v1910 = vunpack.c.h.b16 %v1709
    %v1911 = vunpack.c.l.b16 %v1710
    %v1912 = vunpack.c.h.b16 %v1710
    %v1913 = vunpack.c.l.b16 %v1711
    %v1914 = vunpack.c.h.b16 %v1711
    %v1915 = vunpack.c.l.b16 %v1712
    %v1916 = vunpack.c.h.b16 %v1712
    %v1917 = vpack.c.b16 %v1791, %v1789
    %v1918 = vpack.c.b16 %v1792, %v1790
    %v1919 = vpack.c.b16 %v1795, %v1793
    %v1920 = vpack.c.b16 %v1796, %v1794
    %v1921 = vpack.c.b16 %v1799, %v1797
    %v1922 = vpack.c.b16 %v1800, %v1798
    %v1923 = vpack.c.b16 %v1803, %v1801
    %v1924 = vpack.c.b16 %v1804, %v1802
    %v1925 = vpack.c.b16 %v1807, %v1805
    %v1926 = vpack.c.b16 %v1808, %v1806
    %v1927 = vpack.c.b16 %v1811, %v1809
    %v1928 = vpack.c.b16 %v1812, %v1810
    %v1929 = vpack.c.b16 %v1815, %v1813
    %v1930 = vpack.c.b16 %v1816, %v1814
    %v1931 = vpack.c.b16 %v1819, %v1817
    %v1932 = vpack.c.b16 %v1820, %v1818
    %v1933 = vpack.c.b16 %v1823, %v1821
    %v1934 = vpack.c.b16 %v1824, %v1822
    %v1935 = vpack.c.b16 %v1827, %v1825
    %v1936 = vpack.c.b16 %v1828, %v1826
    %v1937 = vpack.c.b16 %v1831, %v1829
    %v1938 = vpack.c.b16 %v1832, %v1830
    %v1939 = vpack.c.b16 %v1835, %v1833
    %v1940 = vpack.c.b16 %v1836, %v1834
    %v1941 = vpack.c.b16 %v1839, %v1837
    %v1942 = vpack.c.b16 %v1840, %v1838
    %v1943 = vpack.c.b16 %v1843, %v1841
    %v1944 = vpack.c.b16 %v1844, %v1842
    %v1945 = vpack.c.b16 %v1847, %v1845
    %v1946 = vpack.c.b16 %v1848, %v1846
    %v1947 = vpack.c.b16 %v1851, %v1849
    %v1948 = vpack.c.b16 %v1852, %v1850
    %v1949 = vpack.c.b16 %v1855, %v1853
    %v1950 = vpack.c.b16 %v1856, %v1854
    %v1951 = vpack.c.b16 %v1859, %v1857
    %v1952 = vpack.c.b16 %v1860, %v1858
    %v1953 = vpack.c.b16 %v1863, %v1861
    %v1954 = vpack.c.b16 %v1864, %v1862
    %v1955 = vpack.c.b16 %v1867, %v1865
    %v1956 = vpack.c.b16 %v1868, %v1866
    %v1957 = vpack.c.b16 %v1871, %v1869
    %v1958 = vpack.c.b16 %v1872, %v1870
    %v1959 = vpack.c.b16 %v1875, %v1873
    %v1960 = vpack.c.b16 %v1876, %v1874
    %v1961 = vpack.c.b16 %v1879, %v1877
    %v1962 = vpack.c.b16 %v1880, %v1878
    %v1963 = vpack.c.b16 %v1883, %v1881
    %v1964 = vpack.c.b16 %v1884, %v1882
    %v1965 = vpack.c.b16 %v1887, %v1885
    %v1966 = vpack.c.b16 %v1888, %v1886
    %v1967 = vpack.c.b16 %v1891, %v1889
    %v1968 = vpack.c.b16 %v1892, %v1890
    %v1969 = vpack.c.b16 %v1895, %v1893
    %v1970 = vpack.c.b16 %v1896, %v1894
    %v1971 = vpack.c.b16 %v1899, %v1897
    %v1972 = vpack.c.b16 %v1900, %v1898
    %v1973 = vpack.c.b16 %v1903, %v1901
    %v1974 = vpack.c.b16 %v1904, %v1902
    %v1975 = vpack.c.b16 %v1907, %v1905
    %v1976 = vpack.c.b16 %v1908, %v1906
    %v1977 = vpack.c.b16 %v1911, %v1909
    %v1978 = vpack.c.b16 %v1912, %v1910
    %v1979 = vpack.c.b16 %v1915, %v1913
    %v1980 = vpack.c.b16 %v1916, %v1914
    %2045 = vmatprep.subr.bf16.mxu0 %v1932
    %2046 = vmatpush1.bf16.msra.mxu0 %v1931
    %2047 = vmatprep.subr.bf16.mxu0 %v1930
    %2048 = vmatpush1.bf16.msra.mxu0 %v1929
    %2049 = vmatprep.subr.bf16.mxu0 %v1928
    %2050 = vmatpush1.bf16.msra.mxu0 %v1927
    %2051 = vmatprep.subr.bf16.mxu0 %v1926
    %2052 = vmatpush1.bf16.msra.mxu0 %v1925
    %2053 = vmatprep.subr.bf16.mxu0 %v1924
    %2054 = vmatpush1.bf16.msra.mxu0 %v1923
    %2055 = vmatprep.subr.bf16.mxu0 %v1922
    %2056 = vmatpush1.bf16.msra.mxu0 %v1921
    %2057 = vmatprep.subr.bf16.mxu0 %v1920
    %2058 = vmatpush1.bf16.msra.mxu0 %v1919
    %2059 = vmatprep.subr.bf16.mxu0 %v1918
    %2060 = vmatpush1.bf16.msra.mxu0 %v1917
    %2061 = vmatprep.subr.bf16.mxu0 %v1948
    %2062 = vmatpush2.bf16.msra.mxu0 %v1947
    %2063 = vmatprep.subr.bf16.mxu0 %v1946
    %2064 = vmatpush2.bf16.msra.mxu0 %v1945
    %2065 = vmatprep.subr.bf16.mxu0 %v1944
    %2066 = vmatpush2.bf16.msra.mxu0 %v1943
    %2067 = vmatprep.subr.bf16.mxu0 %v1942
    %2068 = vmatpush2.bf16.msra.mxu0 %v1941
    %2069 = vmatprep.subr.bf16.mxu0 %v1940
    %2070 = vmatpush2.bf16.msra.mxu0 %v1939
    %2071 = vmatprep.subr.bf16.mxu0 %v1938
    %2072 = vmatpush2.bf16.msra.mxu0 %v1937
    %2073 = vmatprep.subr.bf16.mxu0 %v1936
    %2074 = vmatpush2.bf16.msra.mxu0 %v1935
    %2075 = vmatprep.subr.bf16.mxu0 %v1934
    %2076 = vmatpush2.bf16.msra.mxu0 %v1933
    %2077 = vmatprep.mubr.bf16.mxu0 %v1646
    %2078 = vmatmul.mubr.bf16.gmra.mxu0 %v1645
    %v2079 = vpop.f32.mrf.mxu0
    %v2080 = vadd.f32 %v1718, %v2079
    %v2081 = vpop.f32.mrf.mxu0
    %v2082 = vadd.f32 %v1722, %v2081
    %v2083 = vpop.f32.mrf.mxu0
    %v2084 = vpop.f32.mrf.mxu0
    %2085 = vdwg.mxu0
    %2086 = vmatprep.subr.bf16.mxu0 %v1964
    %2087 = vmatpush1.bf16.msra.mxu0 %v1963
    %2088 = vmatprep.subr.bf16.mxu0 %v1962
    %2089 = vmatpush1.bf16.msra.mxu0 %v1961
    %2090 = vmatprep.subr.bf16.mxu0 %v1960
    %2091 = vmatpush1.bf16.msra.mxu0 %v1959
    %2092 = vmatprep.subr.bf16.mxu0 %v1958
    %2093 = vmatpush1.bf16.msra.mxu0 %v1957
    %2094 = vmatprep.subr.bf16.mxu0 %v1956
    %2095 = vmatpush1.bf16.msra.mxu0 %v1955
    %2096 = vmatprep.subr.bf16.mxu0 %v1954
    %2097 = vmatpush1.bf16.msra.mxu0 %v1953
    %2098 = vmatprep.subr.bf16.mxu0 %v1952
    %2099 = vmatpush1.bf16.msra.mxu0 %v1951
    %2100 = vmatprep.subr.bf16.mxu0 %v1950
    %2101 = vmatpush1.bf16.msra.mxu0 %v1949
    %2102 = vmatprep.subr.bf16.mxu0 %v1980
    %2103 = vmatpush2.bf16.msra.mxu0 %v1979
    %2104 = vmatprep.subr.bf16.mxu0 %v1978
    %2105 = vmatpush2.bf16.msra.mxu0 %v1977
    %2106 = vmatprep.subr.bf16.mxu0 %v1976
    %2107 = vmatpush2.bf16.msra.mxu0 %v1975
    %2108 = vmatprep.subr.bf16.mxu0 %v1974
    %2109 = vmatpush2.bf16.msra.mxu0 %v1973
    %2110 = vmatprep.subr.bf16.mxu0 %v1972
    %2111 = vmatpush2.bf16.msra.mxu0 %v1971
    %2112 = vmatprep.subr.bf16.mxu0 %v1970
    %2113 = vmatpush2.bf16.msra.mxu0 %v1969
    %2114 = vmatprep.subr.bf16.mxu0 %v1968
    %2115 = vmatpush2.bf16.msra.mxu0 %v1967
    %2116 = vmatprep.subr.bf16.mxu0 %v1966
    %2117 = vmatpush2.bf16.msra.mxu0 %v1965
    %2118 = vmatprep.mubr.bf16.mxu0 %v1648
    %2119 = vmatmul.mubr.bf16.gmra.mxu0 %v1647
    %v2120 = vpop.f32.mrf.mxu0
    %v2121 = vadd.f32 %v2080, %v2120
    %v2122 = vpop.f32.mrf.mxu0
    %v2123 = vadd.f32 %v2082, %v2122
    %v2124 = vpop.f32.mrf.mxu0
    %v2125 = vpop.f32.mrf.mxu0
    %2126 = vdwg.mxu0
    %vm2127 = vcmp.gt.f32.partialorder %v2121, 0.0
    %vm2128 = vcmp.gt.f32.partialorder %v2123, 0.0
    %v2129 = vmul.f32 %v2121, 0.2
    %v2130 = vmul.f32 %v2123, 0.2
    %v2131 = vsel %vm2127, %v2121, %v2129
    %v2132 = vsel %vm2128, %v2123, %v2130
    %v2133 = vpack.c.bf16 %v2131, %v2131
    %v2134 = vpack.c.bf16 %v2132, %v2132
    %v2135 = vld [vmem:[#allocation9] sm:$0xf]
    %v2136 = vld [vmem:[#allocation9 + $0x4] sm:$0xf]
    %v2137 = vld [vmem:[#allocation9 + $0x8] sm:$0xf]
    %v2138 = vld [vmem:[#allocation9 + $0xc] sm:$0xf]
    %v2139 = vld [vmem:[#allocation9 + $0x10] sm:$0xf]
    %v2140 = vld [vmem:[#allocation9 + $0x14] sm:$0xf]
    %v2141 = vld [vmem:[#allocation9 + $0x18] sm:$0xf]
    %v2142 = vld [vmem:[#allocation9 + $0x1c] sm:$0xf]
    %v2143 = vld [vmem:[#allocation9 + $0x20] sm:$0xf]
    %v2144 = vld [vmem:[#allocation9 + $0x24] sm:$0xf]
    %v2145 = vld [vmem:[#allocation9 + $0x28] sm:$0xf]
    %v2146 = vld [vmem:[#allocation9 + $0x2c] sm:$0xf]
    %v2147 = vld [vmem:[#allocation9 + $0x30] sm:$0xf]
    %v2148 = vld [vmem:[#allocation9 + $0x34] sm:$0xf]
    %v2149 = vld [vmem:[#allocation9 + $0x38] sm:$0xf]
    %v2150 = vld [vmem:[#allocation9 + $0x3c] sm:$0xf]
    %v2151 = vld [vmem:[#allocation9 + $0x40] sm:$0xf]
    %v2152 = vld [vmem:[#allocation9 + $0x44] sm:$0xf]
    %v2153 = vld [vmem:[#allocation9 + $0x48] sm:$0xf]
    %v2154 = vld [vmem:[#allocation9 + $0x4c] sm:$0xf]
    %v2155 = vld [vmem:[#allocation9 + $0x50] sm:$0xf]
    %v2156 = vld [vmem:[#allocation9 + $0x54] sm:$0xf]
    %v2157 = vld [vmem:[#allocation9 + $0x58] sm:$0xf]
    %v2158 = vld [vmem:[#allocation9 + $0x5c] sm:$0xf]
    %v2159 = vld [vmem:[#allocation9 + $0x60] sm:$0xf]
    %v2160 = vld [vmem:[#allocation9 + $0x64] sm:$0xf]
    %v2161 = vld [vmem:[#allocation9 + $0x68] sm:$0xf]
    %v2162 = vld [vmem:[#allocation9 + $0x6c] sm:$0xf]
    %v2163 = vld [vmem:[#allocation9 + $0x70] sm:$0xf]
    %v2164 = vld [vmem:[#allocation9 + $0x74] sm:$0xf]
    %v2165 = vld [vmem:[#allocation9 + $0x78] sm:$0xf]
    %v2166 = vld [vmem:[#allocation9 + $0x7c] sm:$0xf]
    %v2167 = vld [vmem:[%s6] sm:$0x1]
    %v2169 = vlaneseq
    %v2170 = vshrl.u32 %v2169, 7
    %v2171 = vsub.s32 0, %v2170
    %v2172 = vrot.slane %v2167, %v2171
    %v2206 = vunpack.c.l.b16 %v2135
    %v2207 = vunpack.c.l.b16 %v2136
    %v2208 = vunpack.c.l.b16 %v2137
    %v2209 = vunpack.c.l.b16 %v2138
    %v2210 = vunpack.c.l.b16 %v2139
    %v2211 = vunpack.c.l.b16 %v2140
    %v2212 = vunpack.c.l.b16 %v2141
    %v2213 = vunpack.c.l.b16 %v2142
    %v2214 = vunpack.c.l.b16 %v2143
    %v2215 = vunpack.c.l.b16 %v2144
    %v2216 = vunpack.c.l.b16 %v2145
    %v2217 = vunpack.c.l.b16 %v2146
    %v2218 = vunpack.c.l.b16 %v2147
    %v2219 = vunpack.c.l.b16 %v2148
    %v2220 = vunpack.c.l.b16 %v2149
    %v2221 = vunpack.c.l.b16 %v2150
    %v2222 = vunpack.c.l.b16 %v2151
    %v2223 = vunpack.c.l.b16 %v2152
    %v2224 = vunpack.c.l.b16 %v2153
    %v2225 = vunpack.c.l.b16 %v2154
    %v2226 = vunpack.c.l.b16 %v2155
    %v2227 = vunpack.c.l.b16 %v2156
    %v2228 = vunpack.c.l.b16 %v2157
    %v2229 = vunpack.c.l.b16 %v2158
    %v2230 = vunpack.c.l.b16 %v2159
    %v2231 = vunpack.c.l.b16 %v2160
    %v2232 = vunpack.c.l.b16 %v2161
    %v2233 = vunpack.c.l.b16 %v2162
    %v2234 = vunpack.c.l.b16 %v2163
    %v2235 = vunpack.c.l.b16 %v2164
    %v2236 = vunpack.c.l.b16 %v2165
    %v2237 = vunpack.c.l.b16 %v2166
    %v2238 = vpack.c.b16 %v2207, %v2206
    %v2239 = vpack.c.b16 %v2209, %v2208
    %v2240 = vpack.c.b16 %v2211, %v2210
    %v2241 = vpack.c.b16 %v2213, %v2212
    %v2242 = vpack.c.b16 %v2215, %v2214
    %v2243 = vpack.c.b16 %v2217, %v2216
    %v2244 = vpack.c.b16 %v2219, %v2218
    %v2245 = vpack.c.b16 %v2221, %v2220
    %v2246 = vpack.c.b16 %v2223, %v2222
    %v2247 = vpack.c.b16 %v2225, %v2224
    %v2248 = vpack.c.b16 %v2227, %v2226
    %v2249 = vpack.c.b16 %v2229, %v2228
    %v2250 = vpack.c.b16 %v2231, %v2230
    %v2251 = vpack.c.b16 %v2233, %v2232
    %v2252 = vpack.c.b16 %v2235, %v2234
    %v2253 = vpack.c.b16 %v2237, %v2236
    %2270 = vmatprep.subr.bf16.mxu0 0
    %2271 = vmatpush1.bf16.msra.mxu0 %v2245
    %2272 = vmatprep.subr.bf16.mxu0 0
    %2273 = vmatpush1.bf16.msra.mxu0 %v2244
    %2274 = vmatprep.subr.bf16.mxu0 0
    %2275 = vmatpush1.bf16.msra.mxu0 %v2243
    %2276 = vmatprep.subr.bf16.mxu0 0
    %2277 = vmatpush1.bf16.msra.mxu0 %v2242
    %2278 = vmatprep.subr.bf16.mxu0 0
    %2279 = vmatpush1.bf16.msra.mxu0 %v2241
    %2280 = vmatprep.subr.bf16.mxu0 0
    %2281 = vmatpush1.bf16.msra.mxu0 %v2240
    %2282 = vmatprep.subr.bf16.mxu0 0
    %2283 = vmatpush1.bf16.msra.mxu0 %v2239
    %2284 = vmatprep.subr.bf16.mxu0 0
    %2285 = vmatpush1.bf16.msra.mxu0 %v2238
    %2286 = vmatprep.subr.bf16.mxu0 0
    %2287 = vmatpush2.bf16.msra.mxu0 %v2253
    %2288 = vmatprep.subr.bf16.mxu0 0
    %2289 = vmatpush2.bf16.msra.mxu0 %v2252
    %2290 = vmatprep.subr.bf16.mxu0 0
    %2291 = vmatpush2.bf16.msra.mxu0 %v2251
    %2292 = vmatprep.subr.bf16.mxu0 0
    %2293 = vmatpush2.bf16.msra.mxu0 %v2250
    %2294 = vmatprep.subr.bf16.mxu0 0
    %2295 = vmatpush2.bf16.msra.mxu0 %v2249
    %2296 = vmatprep.subr.bf16.mxu0 0
    %2297 = vmatpush2.bf16.msra.mxu0 %v2248
    %2298 = vmatprep.subr.bf16.mxu0 0
    %2299 = vmatpush2.bf16.msra.mxu0 %v2247
    %2300 = vmatprep.subr.bf16.mxu0 0
    %2301 = vmatpush2.bf16.msra.mxu0 %v2246
    %2302 = vmatprep.mubr.bf16.mxu0 %v2134
    %2303 = vmatmul.mubr.bf16.gmra.mxu0 %v2133
    %v2304 = vpop.f32.mrf.mxu0
    %v2305 = vadd.f32 %v2172, %v2304
    %v2306 = vpop.f32.mrf.mxu0
    %v2307 = vpop.f32.mrf.mxu0
    %v2308 = vpop.f32.mrf.mxu0
    %2309 = vdwg.mxu0
    %vm2310 = vcmp.gt.f32.partialorder %v2305, 0.0
    %v2311 = vmul.f32 %v2305, 0.2
    %v2312 = vsel %vm2310, %v2305, %v2311
    %v2313 = vld [vmem:[%s7] sm:$0x1]
    %v2314 = vunpack.c.l.bf16 %v2313
    %v2315 = vlaneseq
    %v2316 = vshrl.u32 %v2315, 7
    %v2317 = vsub.s32 0, %v2316
    %v2318 = vrot.slane %v2314, %v2317
    %v2319 = vmul.f32 %v2312, %v2318
    %2320 = vadd.xlane.f32.xlu0 %v2319
    %v2321 = vpop.xlane.xlu0 %2320
    %v2322 = vld [vmem:[#allocation2] sm:$0x1]
    %v2324 = vlaneseq
    %v2325 = vshrl.u32 %v2324, 7
    %v2326 = vsub.s32 0, %v2325
    %v2327 = vrot.slane %v2322, %v2326
    %v2329 = vadd.f32 %v2321, %v2327
    %2331 = vset.pattern.permute.xlu0 0
    %2332 = vperm.xlu0 %2331, %v2329
    %v2333 = vpop.permute.xlu0 %2332
    %2335 = vst [vmem:[#allocation11] sm:$0xff] %v2333
    // Predicated region
    $region54: #{tpu_custom_call.1} parent=1 // pred_check
      _
    $region55: #{tpu_custom_call.1} parent=1 // pred_check_branch
      %2337 = sbr.rel (0) target = $region57
    $region56: #{tpu_custom_call.1} parent=1 // pred_region
      %s2339 = ssub.s32 128, 128
      %2340 = vsyncadd [#allocation5], %s2339
      %s2342 = sshll.u32 [#allocation11], 4
      %s2343 = int_to_ptr.vmem [resolvable:$true] %s2342
      %2345 = dma.vmem_to_hbm [thread:$0]  %s2343, 128, %s9, [#allocation5]
    $region57: #{tpu_custom_call.1} parent=1 // pred_fallthru
      _
    // Predicated region
    $region58: #{tpu_custom_call.1} parent=1 // pred_check
      _
    $region59: #{tpu_custom_call.1} parent=1 // pred_check_branch
      %2347 = sbr.rel (0) target = $region61
    $region60: #{tpu_custom_call.1} parent=1 // pred_region
      %2348 = dma.done [#allocation5], 128
    $region61: #{tpu_custom_call.1} parent=1 // pred_fallthru
      _
    %2349 = vsyncpa [#allocation4], 1
    %2350 = vsyncpa [#allocation7], 1
    %2351 = vsyncpa [#allocation10], 1
    %2352 = vsyncpa [#allocation5], 1

</llo_original>
